<compile_context>
chip_gen: v7x
topology: tpu7x:2x2x1
jax: 0.10.0
libtpu: 0.0.40
codegen_flags: <defaults>
</compile_context>

<pallas_src>
import functools

import jax
import jax.numpy as jnp
from jax import lax
from jax.experimental import pallas as pl
from jax.experimental.pallas import tpu as pltpu


def _round_up(x, m):
    return (x + m - 1) // m * m


def _largest_divisor(n, cap):
    cap = max(1, min(n, cap))
    for d in range(cap, 0, -1):
        if n % d == 0:
            return d
    return 1


def _lstm_chunk_kernel(gx_ref, whh_hbm_ref,
                       out_ref, hn_ref, cn_ref,
                       whh_vmem, dma_sem, h_sc, c_sc,
                       *, hp, tc, sb, n_sub, t_valid, needs_mask, matmul_dtype):
    """One grid step = one (batch_chunk, time_chunk) tile of the recurrence.

    gx_ref   : (Tc, bc, 4*Hp)  precomputed x-projection + bias (bf16 or f32)
    whh_hbm  : (Hp, 4*Hp)      recurrent weights, left in HBM (pl.ANY)
    out_ref  : (Tc, bc, Hp)    per-step hidden states
    hn/cn    : (1, bc, Hp)     final hidden / cell state (written once)
    """
    t_chunk = pl.program_id(1)

    @pl.when(t_chunk == 0)
    def _init():
        # One-time (per batch chunk) copy of the recurrent weights into a
        # single-buffered VMEM scratch.  Start the DMA, hide part of it behind
        # the carry zero-fill, then wait.
        cp = pltpu.make_async_copy(whh_hbm_ref, whh_vmem, dma_sem)
        cp.start()
        h_sc[...] = jnp.zeros_like(h_sc)
        c_sc[...] = jnp.zeros_like(c_sc)
        cp.wait()

    def step(j, carry):
        hs, cs = carry
        # Re-read the weights from VMEM each step (do NOT hold the whole
        # matrix live in vregs across the unrolled loop -> spills).
        w = whh_vmem[...]
        gx_t = gx_ref[j].astype(jnp.float32)          # (bc, 4*Hp)
        if needs_mask:
            valid = (t_chunk * tc + j) < t_valid      # scalar bool
        new_h = []
        new_c = []
        # Interleave n_sub independent batch sub-tiles: sub-tile A's gate math
        # overlaps sub-tile B's matmul fill/drain on the serial critical path.
        for s in range(n_sub):
            h = hs[s]
            c = cs[s]
            gates = gx_t[s * sb:(s + 1) * sb, :] + jnp.dot(
                h.astype(matmul_dtype), w, preferred_element_type=jnp.float32)
            i_g = jax.nn.sigmoid(gates[:, 0 * hp:1 * hp])
            f_g = jax.nn.sigmoid(gates[:, 1 * hp:2 * hp])
            g_g = jnp.tanh(gates[:, 2 * hp:3 * hp])
            o_g = jax.nn.sigmoid(gates[:, 3 * hp:4 * hp])
            c_nxt = f_g * c + i_g * g_g
            h_nxt = o_g * jnp.tanh(c_nxt)
            if needs_mask:
                # Padded (beyond-T) timesteps must not advance the recurrence,
                # so h_n / c_n remain the state at t = T-1.
                h_nxt = jnp.where(valid, h_nxt, h)
                c_nxt = jnp.where(valid, c_nxt, c)
            new_h.append(h_nxt)
            new_c.append(c_nxt)
        # Lane-dense full-tile store (unmasked vst).
        out_ref[j] = jnp.concatenate(new_h, axis=0).astype(out_ref.dtype)
        return (tuple(new_h), tuple(new_c))

    h_full = h_sc[...]
    c_full = c_sc[...]
    init_h = tuple(h_full[s * sb:(s + 1) * sb, :] for s in range(n_sub))
    init_c = tuple(c_full[s * sb:(s + 1) * sb, :] for s in range(n_sub))

    hs, cs = lax.fori_loop(0, tc, step, (init_h, init_c), unroll=True)

    h_cat = jnp.concatenate(hs, axis=0)
    c_cat = jnp.concatenate(cs, axis=0)
    h_sc[...] = h_cat
    c_sc[...] = c_cat

    @pl.when(t_chunk == pl.num_programs(1) - 1)
    def _finalize():
        hn_ref[0] = h_cat.astype(hn_ref.dtype)
        cn_ref[0] = c_cat.astype(cn_ref.dtype)


def lstm_pallas(embedded, w_ih, w_hh, b_ih, b_hh, *,
                time_chunk=32, batch_chunk=None, interleave=2,
                matmul_dtype=jnp.bfloat16, gx_dtype=jnp.bfloat16,
                out_dtype=jnp.float32, core_parallel_batch=False,
                vmem_block_budget_bytes=36 * 1024 * 1024):
    """embedded: (T, B, E) f32.

    Returns (output (T, B, H), (h_n (1, B, H), c_n (1, B, H))), matching
    PyTorch nn.LSTM(num_layers=1) with zero initial state.
    """
    T, B, E = embedded.shape
    H = w_hh.shape[1]

    # ---- Hardware-friendly padding: B -> multiple of 8, H -> multiple of 128.
    Hp = _round_up(H, 128)
    Bp = _round_up(B, 8)
    if batch_chunk is None:
        bc = Bp
    else:
        bc = _round_up(batch_chunk, 8)
        Bp = _round_up(Bp, bc)

    # Independent batch sub-tiles interleaved inside each timestep.
    n_sub = _largest_divisor(bc // 8, max(1, interleave))
    sb = bc // n_sub

    # ---- Derive the time chunk from a VMEM-fit formula (v7x 64 MiB safe).
    gx_bytes = jnp.dtype(gx_dtype).itemsize
    out_bytes = jnp.dtype(out_dtype).itemsize
    w_bytes = jnp.dtype(matmul_dtype).itemsize
    fixed = (Hp * 4 * Hp * w_bytes            # W_hh^T, single-buffered
             + 2 * bc * Hp * 4                # h/c carries (f32)
             + 2 * 2 * bc * Hp * 4)           # h_n / c_n blocks (double-buffered)
    per_t = (2 * bc * 4 * Hp * gx_bytes       # gx block, double-buffered
             + 2 * bc * Hp * out_bytes)       # out block, double-buffered
    tc_cap = max(1, (vmem_block_budget_bytes - fixed) // per_t)
    Tc = int(max(1, min(time_chunk, T, tc_cap)))
    Tp = _round_up(T, Tc)                     # masked final chunk, no Tc collapse
    needs_mask = (Tp != T)

    # ---- Hoisted input projection, directly in the padded (Tp, Bp, 4*Hp)
    # layout and in bf16 (f32 accumulation).  Per-gate columns are padded
    # H -> Hp with zero weight/bias so padded gate columns of gx are exactly
    # zero (padded h/c columns then stay zero through the recurrence).
    wih_t = w_ih.T.reshape(E, 4, H)
    wih_t = jnp.pad(wih_t, ((0, 0), (0, 0), (0, Hp - H)))
    wih_t = wih_t.reshape(E, 4 * Hp).astype(matmul_dtype)
    bias = (b_ih + b_hh).reshape(4, H).astype(jnp.float32)
    bias_p = jnp.pad(bias, ((0, 0), (0, Hp - H))).reshape(4 * Hp)

    emb_p = jnp.pad(embedded, ((0, Tp - T), (0, Bp - B), (0, 0)))
    gx = jnp.dot(emb_p.reshape(Tp * Bp, E).astype(matmul_dtype), wih_t,
                 preferred_element_type=jnp.float32) + bias_p
    gx = gx.reshape(Tp, Bp, 4 * Hp).astype(gx_dtype)

    # Recurrent weights, per-gate padded, transposed for h @ W_hh^T.
    whh_t = w_hh.T.reshape(H, 4, H)
    whh_t = jnp.pad(whh_t, ((0, Hp - H), (0, 0), (0, Hp - H)))
    whh_t = whh_t.reshape(Hp, 4 * Hp).astype(matmul_dtype)

    kernel = functools.partial(
        _lstm_chunk_kernel, hp=Hp, tc=Tc, sb=sb, n_sub=n_sub,
        t_valid=T, needs_mask=needs_mask, matmul_dtype=matmul_dtype)

    n_batch_chunks = Bp // bc
    if core_parallel_batch and n_batch_chunks > 1:
        batch_sem = pltpu.CORE_PARALLEL    # engage both TCs on v7x
    else:
        batch_sem = "parallel"

    needed = fixed + Tc * per_t
    vmem_limit = int(min(48 * 1024 * 1024, max(2 * needed, 16 * 1024 * 1024)))

    out_p, hn_p, cn_p = pl.pallas_call(
        kernel,
        out_shape=(
            jax.ShapeDtypeStruct((Tp, Bp, Hp), out_dtype),
            jax.ShapeDtypeStruct((1, Bp, Hp), jnp.float32),
            jax.ShapeDtypeStruct((1, Bp, Hp), jnp.float32),
        ),
        grid_spec=pltpu.PrefetchScalarGridSpec(
            num_scalar_prefetch=0,
            grid=(n_batch_chunks, Tp // Tc),
            in_specs=[
                # Precomputed x-projection, pipelined (double-buffered).
                pl.BlockSpec((Tc, bc, 4 * Hp), lambda b, t: (t, b, 0)),
                # Recurrent weights stay in HBM; copied once into VMEM scratch.
                pl.BlockSpec(memory_space=pl.ANY),
            ],
            out_specs=[
                pl.BlockSpec((Tc, bc, Hp), lambda b, t: (t, b, 0)),   # output slab
                pl.BlockSpec((1, bc, Hp), lambda b, t: (0, b, 0)),    # h_n (resident)
                pl.BlockSpec((1, bc, Hp), lambda b, t: (0, b, 0)),    # c_n (resident)
            ],
            scratch_shapes=[
                pltpu.VMEM((Hp, 4 * Hp), matmul_dtype),   # single-buffered W_hh^T
                pltpu.SemaphoreType.DMA(()),              # DMA completion sem
                pltpu.VMEM((bc, Hp), jnp.float32),        # h carry
                pltpu.VMEM((bc, Hp), jnp.float32),        # c carry
            ],
        ),
        compiler_params=pltpu.CompilerParams(
            dimension_semantics=(batch_sem, "arbitrary"),
            vmem_limit_bytes=vmem_limit,
        ),
    )(gx, whh_t)

    out = out_p[:T, :B, :H].astype(jnp.float32)
    h_n = hn_p[:, :B, :H]
    c_n = cn_p[:, :B, :H]
    return out, (h_n, c_n)


def encoder_rnn_forward(batch_src, params, *, time_chunk=32, batch_chunk=None,
                        interleave=2, matmul_dtype=jnp.bfloat16,
                        gx_dtype=jnp.bfloat16):
    """batch_src: (T, B) int32 token ids (seq-major, like nn.LSTM default)."""
    # TODO(synk): the embedding gather is data-dependent; it is done in plain
    # JAX (XLA gather) rather than inside the kernel.  padding_idx=1 row is
    # zero in the table so the forward matches nn.Embedding(padding_idx=1).
    embedded = jnp.take(params["embedding"], batch_src, axis=0)   # (T, B, E)
    return lstm_pallas(embedded,
                       params["w_ih"], params["w_hh"],
                       params["b_ih"], params["b_hh"],
                       time_chunk=time_chunk, batch_chunk=batch_chunk,
                       interleave=interleave, matmul_dtype=matmul_dtype,
                       gx_dtype=gx_dtype)


def init_params(key, vocab_size, embed_size, hidden_size):
    k0, k1, k2, k3, k4 = jax.random.split(key, 5)
    scale = 1.0 / jnp.sqrt(hidden_size)
    emb = jax.random.normal(k0, (vocab_size, embed_size), jnp.float32) * 0.1
    emb = emb.at[1].set(0.0)   # padding_idx=1
    return {
        "embedding": emb,
        "w_ih": jax.random.uniform(k1, (4 * hidden_size, embed_size),
                                   jnp.float32, -scale, scale),
        "w_hh": jax.random.uniform(k2, (4 * hidden_size, hidden_size),
                                   jnp.float32, -scale, scale),
        "b_ih": jax.random.uniform(k3, (4 * hidden_size,), jnp.float32, -scale, scale),
        "b_hh": jax.random.uniform(k4, (4 * hidden_size,), jnp.float32, -scale, scale),
    }


def _reference_lstm(embedded, w_ih, w_hh, b_ih, b_hh):
    """Pure-JAX f32 reference (lax.scan), PyTorch nn.LSTM gate order i,f,g,o."""
    T, B, E = embedded.shape
    H = w_hh.shape[1]
    bias = b_ih + b_hh

    def step(carry, x_t):
        h, c = carry
        gates = x_t @ w_ih.T + h @ w_hh.T + bias
        i = jax.nn.sigmoid(gates[:, 0 * H:1 * H])
        f = jax.nn.sigmoid(gates[:, 1 * H:2 * H])
        g = jnp.tanh(gates[:, 2 * H:3 * H])
        o = jax.nn.sigmoid(gates[:, 3 * H:4 * H])
        c = f * c + i * g
        h = o * jnp.tanh(c)
        return (h, c), h

    h0 = jnp.zeros((B, H), jnp.float32)
    c0 = jnp.zeros((B, H), jnp.float32)
    (h_n, c_n), ys = lax.scan(step, (h0, c0), embedded)
    return ys, (h_n[None], c_n[None])


def _check_case(key, *, vocab_size, embed_size, hidden_size, seq_len, batch,
                time_chunk, interleave):
    pk, dk = jax.random.split(key)
    params = init_params(pk, vocab_size, embed_size, hidden_size)
    batch_src = jax.random.randint(dk, (seq_len, batch), 0, vocab_size, jnp.int32)
    batch_src = batch_src.at[-1, :].set(1)   # some padding tokens (padding_idx=1)
    # NOTE: like nn.LSTM without pack_padded_sequence, padding tokens still
    # advance h/c (matches the reference PyTorch module).

    fwd = jax.jit(functools.partial(encoder_rnn_forward,
                                    time_chunk=time_chunk,
                                    interleave=interleave))
    output, (h_n, c_n) = jax.block_until_ready(fwd(batch_src, params))

    emb = jnp.take(params["embedding"], batch_src, axis=0)
    ref_out, (ref_h, ref_c) = _reference_lstm(
        emb, params["w_ih"], params["w_hh"], params["b_ih"], params["b_hh"])
    assert output.shape == (seq_len, batch, hidden_size)
    assert h_n.shape == (1, batch, hidden_size)
    assert c_n.shape == (1, batch, hidden_size)
    assert jnp.allclose(output, ref_out, atol=2e-2), float(
        jnp.max(jnp.abs(output - ref_out)))
    assert jnp.allclose(h_n, ref_h, atol=2e-2)
    assert jnp.allclose(c_n, ref_c, atol=2e-2)


if __name__ == "__main__":
    key = jax.random.PRNGKey(0)
    k1, k2 = jax.random.split(key)

    # Case 1: small, even shapes (single time chunk, single sub-tile).
    _check_case(k1, vocab_size=32, embed_size=16, hidden_size=32,
                seq_len=8, batch=4, time_chunk=32, interleave=2)

    # Case 2: odd T (masked final time chunk), padded H/B, 2 interleaved
    # batch sub-tiles, multiple time chunks (carry persistence across chunks).
    _check_case(k2, vocab_size=50, embed_size=24, hidden_size=40,
                seq_len=7, batch=12, time_chunk=4, interleave=2)

    print("KERNEL_OK")
</pallas_src>

<mosaic_0001>
module attributes {stable_mosaic.version = 11 : i64} {
  func.func @_lstm_chunk_kernel(%arg0: i32, %arg1: i32, %arg2: memref<8x8x512xbf16, #tpu.memory_space<vmem>>, %arg3: memref<128x512xbf16, #tpu.memory_space<any>>, %arg4: memref<8x8x128xf32, #tpu.memory_space<vmem>>, %arg5: memref<1x8x128xf32, #tpu.memory_space<vmem>>, %arg6: memref<1x8x128xf32, #tpu.memory_space<vmem>>, %arg7: memref<128x512xbf16, #tpu.memory_space<vmem>>, %arg8: memref<!tpu.dma_semaphore, #tpu.memory_space<semaphore_mem>>, %arg9: memref<8x128xf32, #tpu.memory_space<vmem>>, %arg10: memref<8x128xf32, #tpu.memory_space<vmem>>) attributes {dimension_semantics = [#tpu.dimension_semantics<parallel>, #tpu.dimension_semantics<arbitrary>], iteration_bounds = array<i64: 1, 1>, scalar_prefetch = 0 : i64, scratch_operands = 4 : i64, tpu.core_type = #tpu.core_type<tc>, window_params = [{transform_indices = @transform_0, window_bounds = array<i64: 8, 8, 512>}, {}, {transform_indices = @transform_2, window_bounds = array<i64: 8, 8, 128>}, {transform_indices = @transform_3, window_bounds = array<i64: 1, 8, 128>}, {transform_indices = @transform_4, window_bounds = array<i64: 1, 8, 128>}]} {
    %c0_i32 = arith.constant 0 : i32
    %0 = arith.cmpi eq, %arg1, %c0_i32 : i32
    %1 = arith.extui %0 : i1 to i32
    %c0_i32_0 = arith.constant 0 : i32
    %2 = arith.cmpi ne, %1, %c0_i32_0 : i32
    scf.if %2 {
      tpu.enqueue_dma source(%arg3 : memref<128x512xbf16, #tpu.memory_space<any>>) target(%arg7 : memref<128x512xbf16, #tpu.memory_space<vmem>>) target_semaphore(%arg8 : memref<!tpu.dma_semaphore, #tpu.memory_space<semaphore_mem>>)
      %cst_90 = arith.constant 0.000000e+00 : f32
      %306 = vector.broadcast %cst_90 : f32 to vector<8x128xf32>
      %c0_91 = arith.constant 0 : index
      %c0_92 = arith.constant 0 : index
      %307 = vector.load %arg9[%c0_91, %c0_92] : memref<8x128xf32, #tpu.memory_space<vmem>>, vector<8x128xf32>
      tpu.vector_store %arg9[%c0_91, %c0_92], %306 {strides = array<i32>} : memref<8x128xf32, #tpu.memory_space<vmem>>, vector<8x128xf32>,
      %cst_93 = arith.constant 0.000000e+00 : f32
      %308 = vector.broadcast %cst_93 : f32 to vector<8x128xf32>
      %c0_94 = arith.constant 0 : index
      %c0_95 = arith.constant 0 : index
      %309 = vector.load %arg10[%c0_94, %c0_95] : memref<8x128xf32, #tpu.memory_space<vmem>>, vector<8x128xf32>
      tpu.vector_store %arg10[%c0_94, %c0_95], %308 {strides = array<i32>} : memref<8x128xf32, #tpu.memory_space<vmem>>, vector<8x128xf32>,
      tpu.wait_dma2 semaphore(%arg8 : memref<!tpu.dma_semaphore, #tpu.memory_space<semaphore_mem>>) src(%arg3 : memref<128x512xbf16, #tpu.memory_space<any>>) dst(%arg7 : memref<128x512xbf16, #tpu.memory_space<vmem>>)
    } else {
    }
    %c0 = arith.constant 0 : index
    %c0_1 = arith.constant 0 : index
    %3 = vector.load %arg9[%c0, %c0_1] : memref<8x128xf32, #tpu.memory_space<vmem>>, vector<8x128xf32>
    %c0_2 = arith.constant 0 : index
    %c0_3 = arith.constant 0 : index
    %4 = vector.load %arg10[%c0_2, %c0_3] : memref<8x128xf32, #tpu.memory_space<vmem>>, vector<8x128xf32>
    %c0_i32_4 = arith.constant 0 : i32
    %c0_5 = arith.constant 0 : index
    %c0_6 = arith.constant 0 : index
    %5 = vector.load %arg7[%c0_5, %c0_6] : memref<128x512xbf16, #tpu.memory_space<vmem>>, vector<128x512xbf16>
    %6 = arith.index_cast %c0_i32_4 : i32 to index
    %c0_7 = arith.constant 0 : index
    %c0_8 = arith.constant 0 : index
    %7 = vector.load %arg2[%6, %c0_7, %c0_8] : memref<8x8x512xbf16, #tpu.memory_space<vmem>>, vector<1x8x512xbf16>
    %8 = vector.shape_cast %7 : vector<1x8x512xbf16> to vector<8x512xbf16>
    %9 = arith.extf %8 : vector<8x512xbf16> to vector<8x512xf32>
    %10 = arith.truncf %3 : vector<8x128xf32> to vector<8x128xbf16>
    %cst = arith.constant dense<0.000000e+00> : vector<8x512xf32>
    %11 = tpu.matmul %10, %5, %cst {dimension_numbers = #tpu.dot_dimension_numbers<[1], [0], [0], [1], [0, 0, 1, 1], [], []>} : vector<8x128xbf16>, vector<128x512xbf16>, vector<8x512xf32> -> vector<8x512xf32>
    %12 = arith.addf %9, %11 : vector<8x512xf32>
    %13 = vector.extract_strided_slice %12 {offsets = [0, 0], sizes = [8, 128], strides = [1, 1]} : vector<8x512xf32> to vector<8x128xf32>
    %14 = arith.negf %13 : vector<8x128xf32>
    %15 = math.exp %14 : vector<8x128xf32>
    %cst_9 = arith.constant 1.000000e+00 : f32
    %16 = vector.broadcast %cst_9 : f32 to vector<8x128xf32>
    %17 = arith.addf %16, %15 : vector<8x128xf32>
    %18 = arith.divf %16, %17 : vector<8x128xf32>
    %19 = vector.extract_strided_slice %12 {offsets = [0, 128], sizes = [8, 128], strides = [1, 1]} : vector<8x512xf32> to vector<8x128xf32>
    %20 = arith.negf %19 : vector<8x128xf32>
    %21 = math.exp %20 : vector<8x128xf32>
    %cst_10 = arith.constant 1.000000e+00 : f32
    %22 = vector.broadcast %cst_10 : f32 to vector<8x128xf32>
    %23 = arith.addf %22, %21 : vector<8x128xf32>
    %24 = arith.divf %22, %23 : vector<8x128xf32>
    %25 = vector.extract_strided_slice %12 {offsets = [0, 256], sizes = [8, 128], strides = [1, 1]} : vector<8x512xf32> to vector<8x128xf32>
    %26 = math.tanh %25 : vector<8x128xf32>
    %27 = vector.extract_strided_slice %12 {offsets = [0, 384], sizes = [8, 128], strides = [1, 1]} : vector<8x512xf32> to vector<8x128xf32>
    %28 = arith.negf %27 : vector<8x128xf32>
    %29 = math.exp %28 : vector<8x128xf32>
    %cst_11 = arith.constant 1.000000e+00 : f32
    %30 = vector.broadcast %cst_11 : f32 to vector<8x128xf32>
    %31 = arith.addf %30, %29 : vector<8x128xf32>
    %32 = arith.divf %30, %31 : vector<8x128xf32>
    %33 = arith.mulf %24, %4 : vector<8x128xf32>
    %34 = arith.mulf %18, %26 : vector<8x128xf32>
    %35 = arith.addf %33, %34 : vector<8x128xf32>
    %36 = math.tanh %35 : vector<8x128xf32>
    %37 = arith.mulf %32, %36 : vector<8x128xf32>
    %38 = arith.index_cast %c0_i32_4 : i32 to index
    %c0_12 = arith.constant 0 : index
    %c0_13 = arith.constant 0 : index
    %39 = vector.load %arg4[%38, %c0_12, %c0_13] : memref<8x8x128xf32, #tpu.memory_space<vmem>>, vector<1x8x128xf32>
    %40 = vector.shape_cast %39 : vector<1x8x128xf32> to vector<8x128xf32>
    %41 = vector.shape_cast %37 : vector<8x128xf32> to vector<1x8x128xf32>
    tpu.vector_store %arg4[%38, %c0_12, %c0_13], %41 {strides = array<i32>} : memref<8x8x128xf32, #tpu.memory_space<vmem>>, vector<1x8x128xf32>,
    %c1_i32 = arith.constant 1 : i32
    %c0_14 = arith.constant 0 : index
    %c0_15 = arith.constant 0 : index
    %42 = vector.load %arg7[%c0_14, %c0_15] : memref<128x512xbf16, #tpu.memory_space<vmem>>, vector<128x512xbf16>
    %43 = arith.index_cast %c1_i32 : i32 to index
    %c0_16 = arith.constant 0 : index
    %c0_17 = arith.constant 0 : index
    %44 = vector.load %arg2[%43, %c0_16, %c0_17] : memref<8x8x512xbf16, #tpu.memory_space<vmem>>, vector<1x8x512xbf16>
    %45 = vector.shape_cast %44 : vector<1x8x512xbf16> to vector<8x512xbf16>
    %46 = arith.extf %45 : vector<8x512xbf16> to vector<8x512xf32>
    %47 = arith.truncf %37 : vector<8x128xf32> to vector<8x128xbf16>
    %cst_18 = arith.constant dense<0.000000e+00> : vector<8x512xf32>
    %48 = tpu.matmul %47, %42, %cst_18 {dimension_numbers = #tpu.dot_dimension_numbers<[1], [0], [0], [1], [0, 0, 1, 1], [], []>} : vector<8x128xbf16>, vector<128x512xbf16>, vector<8x512xf32> -> vector<8x512xf32>
    %49 = arith.addf %46, %48 : vector<8x512xf32>
    %50 = vector.extract_strided_slice %49 {offsets = [0, 0], sizes = [8, 128], strides = [1, 1]} : vector<8x512xf32> to vector<8x128xf32>
    %51 = arith.negf %50 : vector<8x128xf32>
    %52 = math.exp %51 : vector<8x128xf32>
    %cst_19 = arith.constant 1.000000e+00 : f32
    %53 = vector.broadcast %cst_19 : f32 to vector<8x128xf32>
    %54 = arith.addf %53, %52 : vector<8x128xf32>
    %55 = arith.divf %53, %54 : vector<8x128xf32>
    %56 = vector.extract_strided_slice %49 {offsets = [0, 128], sizes = [8, 128], strides = [1, 1]} : vector<8x512xf32> to vector<8x128xf32>
    %57 = arith.negf %56 : vector<8x128xf32>
    %58 = math.exp %57 : vector<8x128xf32>
    %cst_20 = arith.constant 1.000000e+00 : f32
    %59 = vector.broadcast %cst_20 : f32 to vector<8x128xf32>
    %60 = arith.addf %59, %58 : vector<8x128xf32>
    %61 = arith.divf %59, %60 : vector<8x128xf32>
    %62 = vector.extract_strided_slice %49 {offsets = [0, 256], sizes = [8, 128], strides = [1, 1]} : vector<8x512xf32> to vector<8x128xf32>
    %63 = math.tanh %62 : vector<8x128xf32>
    %64 = vector.extract_strided_slice %49 {offsets = [0, 384], sizes = [8, 128], strides = [1, 1]} : vector<8x512xf32> to vector<8x128xf32>
    %65 = arith.negf %64 : vector<8x128xf32>
    %66 = math.exp %65 : vector<8x128xf32>
    %cst_21 = arith.constant 1.000000e+00 : f32
    %67 = vector.broadcast %cst_21 : f32 to vector<8x128xf32>
    %68 = arith.addf %67, %66 : vector<8x128xf32>
    %69 = arith.divf %67, %68 : vector<8x128xf32>
    %70 = arith.mulf %61, %35 : vector<8x128xf32>
    %71 = arith.mulf %55, %63 : vector<8x128xf32>
    %72 = arith.addf %70, %71 : vector<8x128xf32>
    %73 = math.tanh %72 : vector<8x128xf32>
    %74 = arith.mulf %69, %73 : vector<8x128xf32>
    %75 = arith.index_cast %c1_i32 : i32 to index
    %c0_22 = arith.constant 0 : index
    %c0_23 = arith.constant 0 : index
    %76 = vector.load %arg4[%75, %c0_22, %c0_23] : memref<8x8x128xf32, #tpu.memory_space<vmem>>, vector<1x8x128xf32>
    %77 = vector.shape_cast %76 : vector<1x8x128xf32> to vector<8x128xf32>
    %78 = vector.shape_cast %74 : vector<8x128xf32> to vector<1x8x128xf32>
    tpu.vector_store %arg4[%75, %c0_22, %c0_23], %78 {strides = array<i32>} : memref<8x8x128xf32, #tpu.memory_space<vmem>>, vector<1x8x128xf32>,
    %c2_i32 = arith.constant 2 : i32
    %c0_24 = arith.constant 0 : index
    %c0_25 = arith.constant 0 : index
    %79 = vector.load %arg7[%c0_24, %c0_25] : memref<128x512xbf16, #tpu.memory_space<vmem>>, vector<128x512xbf16>
    %80 = arith.index_cast %c2_i32 : i32 to index
    %c0_26 = arith.constant 0 : index
    %c0_27 = arith.constant 0 : index
    %81 = vector.load %arg2[%80, %c0_26, %c0_27] : memref<8x8x512xbf16, #tpu.memory_space<vmem>>, vector<1x8x512xbf16>
    %82 = vector.shape_cast %81 : vector<1x8x512xbf16> to vector<8x512xbf16>
    %83 = arith.extf %82 : vector<8x512xbf16> to vector<8x512xf32>
    %84 = arith.truncf %74 : vector<8x128xf32> to vector<8x128xbf16>
    %cst_28 = arith.constant dense<0.000000e+00> : vector<8x512xf32>
    %85 = tpu.matmul %84, %79, %cst_28 {dimension_numbers = #tpu.dot_dimension_numbers<[1], [0], [0], [1], [0, 0, 1, 1], [], []>} : vector<8x128xbf16>, vector<128x512xbf16>, vector<8x512xf32> -> vector<8x512xf32>
    %86 = arith.addf %83, %85 : vector<8x512xf32>
    %87 = vector.extract_strided_slice %86 {offsets = [0, 0], sizes = [8, 128], strides = [1, 1]} : vector<8x512xf32> to vector<8x128xf32>
    %88 = arith.negf %87 : vector<8x128xf32>
    %89 = math.exp %88 : vector<8x128xf32>
    %cst_29 = arith.constant 1.000000e+00 : f32
    %90 = vector.broadcast %cst_29 : f32 to vector<8x128xf32>
    %91 = arith.addf %90, %89 : vector<8x128xf32>
    %92 = arith.divf %90, %91 : vector<8x128xf32>
    %93 = vector.extract_strided_slice %86 {offsets = [0, 128], sizes = [8, 128], strides = [1, 1]} : vector<8x512xf32> to vector<8x128xf32>
    %94 = arith.negf %93 : vector<8x128xf32>
    %95 = math.exp %94 : vector<8x128xf32>
    %cst_30 = arith.constant 1.000000e+00 : f32
    %96 = vector.broadcast %cst_30 : f32 to vector<8x128xf32>
    %97 = arith.addf %96, %95 : vector<8x128xf32>
    %98 = arith.divf %96, %97 : vector<8x128xf32>
    %99 = vector.extract_strided_slice %86 {offsets = [0, 256], sizes = [8, 128], strides = [1, 1]} : vector<8x512xf32> to vector<8x128xf32>
    %100 = math.tanh %99 : vector<8x128xf32>
    %101 = vector.extract_strided_slice %86 {offsets = [0, 384], sizes = [8, 128], strides = [1, 1]} : vector<8x512xf32> to vector<8x128xf32>
    %102 = arith.negf %101 : vector<8x128xf32>
    %103 = math.exp %102 : vector<8x128xf32>
    %cst_31 = arith.constant 1.000000e+00 : f32
    %104 = vector.broadcast %cst_31 : f32 to vector<8x128xf32>
    %105 = arith.addf %104, %103 : vector<8x128xf32>
    %106 = arith.divf %104, %105 : vector<8x128xf32>
    %107 = arith.mulf %98, %72 : vector<8x128xf32>
    %108 = arith.mulf %92, %100 : vector<8x128xf32>
    %109 = arith.addf %107, %108 : vector<8x128xf32>
    %110 = math.tanh %109 : vector<8x128xf32>
    %111 = arith.mulf %106, %110 : vector<8x128xf32>
    %112 = arith.index_cast %c2_i32 : i32 to index
    %c0_32 = arith.constant 0 : index
    %c0_33 = arith.constant 0 : index
    %113 = vector.load %arg4[%112, %c0_32, %c0_33] : memref<8x8x128xf32, #tpu.memory_space<vmem>>, vector<1x8x128xf32>
    %114 = vector.shape_cast %113 : vector<1x8x128xf32> to vector<8x128xf32>
    %115 = vector.shape_cast %111 : vector<8x128xf32> to vector<1x8x128xf32>
    tpu.vector_store %arg4[%112, %c0_32, %c0_33], %115 {strides = array<i32>} : memref<8x8x128xf32, #tpu.memory_space<vmem>>, vector<1x8x128xf32>,
    %c3_i32 = arith.constant 3 : i32
    %c0_34 = arith.constant 0 : index
    %c0_35 = arith.constant 0 : index
    %116 = vector.load %arg7[%c0_34, %c0_35] : memref<128x512xbf16, #tpu.memory_space<vmem>>, vector<128x512xbf16>
    %117 = arith.index_cast %c3_i32 : i32 to index
    %c0_36 = arith.constant 0 : index
    %c0_37 = arith.constant 0 : index
    %118 = vector.load %arg2[%117, %c0_36, %c0_37] : memref<8x8x512xbf16, #tpu.memory_space<vmem>>, vector<1x8x512xbf16>
    %119 = vector.shape_cast %118 : vector<1x8x512xbf16> to vector<8x512xbf16>
    %120 = arith.extf %119 : vector<8x512xbf16> to vector<8x512xf32>
    %121 = arith.truncf %111 : vector<8x128xf32> to vector<8x128xbf16>
    %cst_38 = arith.constant dense<0.000000e+00> : vector<8x512xf32>
    %122 = tpu.matmul %121, %116, %cst_38 {dimension_numbers = #tpu.dot_dimension_numbers<[1], [0], [0], [1], [0, 0, 1, 1], [], []>} : vector<8x128xbf16>, vector<128x512xbf16>, vector<8x512xf32> -> vector<8x512xf32>
    %123 = arith.addf %120, %122 : vector<8x512xf32>
    %124 = vector.extract_strided_slice %123 {offsets = [0, 0], sizes = [8, 128], strides = [1, 1]} : vector<8x512xf32> to vector<8x128xf32>
    %125 = arith.negf %124 : vector<8x128xf32>
    %126 = math.exp %125 : vector<8x128xf32>
    %cst_39 = arith.constant 1.000000e+00 : f32
    %127 = vector.broadcast %cst_39 : f32 to vector<8x128xf32>
    %128 = arith.addf %127, %126 : vector<8x128xf32>
    %129 = arith.divf %127, %128 : vector<8x128xf32>
    %130 = vector.extract_strided_slice %123 {offsets = [0, 128], sizes = [8, 128], strides = [1, 1]} : vector<8x512xf32> to vector<8x128xf32>
    %131 = arith.negf %130 : vector<8x128xf32>
    %132 = math.exp %131 : vector<8x128xf32>
    %cst_40 = arith.constant 1.000000e+00 : f32
    %133 = vector.broadcast %cst_40 : f32 to vector<8x128xf32>
    %134 = arith.addf %133, %132 : vector<8x128xf32>
    %135 = arith.divf %133, %134 : vector<8x128xf32>
    %136 = vector.extract_strided_slice %123 {offsets = [0, 256], sizes = [8, 128], strides = [1, 1]} : vector<8x512xf32> to vector<8x128xf32>
    %137 = math.tanh %136 : vector<8x128xf32>
    %138 = vector.extract_strided_slice %123 {offsets = [0, 384], sizes = [8, 128], strides = [1, 1]} : vector<8x512xf32> to vector<8x128xf32>
    %139 = arith.negf %138 : vector<8x128xf32>
    %140 = math.exp %139 : vector<8x128xf32>
    %cst_41 = arith.constant 1.000000e+00 : f32
    %141 = vector.broadcast %cst_41 : f32 to vector<8x128xf32>
    %142 = arith.addf %141, %140 : vector<8x128xf32>
    %143 = arith.divf %141, %142 : vector<8x128xf32>
    %144 = arith.mulf %135, %109 : vector<8x128xf32>
    %145 = arith.mulf %129, %137 : vector<8x128xf32>
    %146 = arith.addf %144, %145 : vector<8x128xf32>
    %147 = math.tanh %146 : vector<8x128xf32>
    %148 = arith.mulf %143, %147 : vector<8x128xf32>
    %149 = arith.index_cast %c3_i32 : i32 to index
    %c0_42 = arith.constant 0 : index
    %c0_43 = arith.constant 0 : index
    %150 = vector.load %arg4[%149, %c0_42, %c0_43] : memref<8x8x128xf32, #tpu.memory_space<vmem>>, vector<1x8x128xf32>
    %151 = vector.shape_cast %150 : vector<1x8x128xf32> to vector<8x128xf32>
    %152 = vector.shape_cast %148 : vector<8x128xf32> to vector<1x8x128xf32>
    tpu.vector_store %arg4[%149, %c0_42, %c0_43], %152 {strides = array<i32>} : memref<8x8x128xf32, #tpu.memory_space<vmem>>, vector<1x8x128xf32>,
    %c4_i32 = arith.constant 4 : i32
    %c0_44 = arith.constant 0 : index
    %c0_45 = arith.constant 0 : index
    %153 = vector.load %arg7[%c0_44, %c0_45] : memref<128x512xbf16, #tpu.memory_space<vmem>>, vector<128x512xbf16>
    %154 = arith.index_cast %c4_i32 : i32 to index
    %c0_46 = arith.constant 0 : index
    %c0_47 = arith.constant 0 : index
    %155 = vector.load %arg2[%154, %c0_46, %c0_47] : memref<8x8x512xbf16, #tpu.memory_space<vmem>>, vector<1x8x512xbf16>
    %156 = vector.shape_cast %155 : vector<1x8x512xbf16> to vector<8x512xbf16>
    %157 = arith.extf %156 : vector<8x512xbf16> to vector<8x512xf32>
    %158 = arith.truncf %148 : vector<8x128xf32> to vector<8x128xbf16>
    %cst_48 = arith.constant dense<0.000000e+00> : vector<8x512xf32>
    %159 = tpu.matmul %158, %153, %cst_48 {dimension_numbers = #tpu.dot_dimension_numbers<[1], [0], [0], [1], [0, 0, 1, 1], [], []>} : vector<8x128xbf16>, vector<128x512xbf16>, vector<8x512xf32> -> vector<8x512xf32>
    %160 = arith.addf %157, %159 : vector<8x512xf32>
    %161 = vector.extract_strided_slice %160 {offsets = [0, 0], sizes = [8, 128], strides = [1, 1]} : vector<8x512xf32> to vector<8x128xf32>
    %162 = arith.negf %161 : vector<8x128xf32>
    %163 = math.exp %162 : vector<8x128xf32>
    %cst_49 = arith.constant 1.000000e+00 : f32
    %164 = vector.broadcast %cst_49 : f32 to vector<8x128xf32>
    %165 = arith.addf %164, %163 : vector<8x128xf32>
    %166 = arith.divf %164, %165 : vector<8x128xf32>
    %167 = vector.extract_strided_slice %160 {offsets = [0, 128], sizes = [8, 128], strides = [1, 1]} : vector<8x512xf32> to vector<8x128xf32>
    %168 = arith.negf %167 : vector<8x128xf32>
    %169 = math.exp %168 : vector<8x128xf32>
    %cst_50 = arith.constant 1.000000e+00 : f32
    %170 = vector.broadcast %cst_50 : f32 to vector<8x128xf32>
    %171 = arith.addf %170, %169 : vector<8x128xf32>
    %172 = arith.divf %170, %171 : vector<8x128xf32>
    %173 = vector.extract_strided_slice %160 {offsets = [0, 256], sizes = [8, 128], strides = [1, 1]} : vector<8x512xf32> to vector<8x128xf32>
    %174 = math.tanh %173 : vector<8x128xf32>
    %175 = vector.extract_strided_slice %160 {offsets = [0, 384], sizes = [8, 128], strides = [1, 1]} : vector<8x512xf32> to vector<8x128xf32>
    %176 = arith.negf %175 : vector<8x128xf32>
    %177 = math.exp %176 : vector<8x128xf32>
    %cst_51 = arith.constant 1.000000e+00 : f32
    %178 = vector.broadcast %cst_51 : f32 to vector<8x128xf32>
    %179 = arith.addf %178, %177 : vector<8x128xf32>
    %180 = arith.divf %178, %179 : vector<8x128xf32>
    %181 = arith.mulf %172, %146 : vector<8x128xf32>
    %182 = arith.mulf %166, %174 : vector<8x128xf32>
    %183 = arith.addf %181, %182 : vector<8x128xf32>
    %184 = math.tanh %183 : vector<8x128xf32>
    %185 = arith.mulf %180, %184 : vector<8x128xf32>
    %186 = arith.index_cast %c4_i32 : i32 to index
    %c0_52 = arith.constant 0 : index
    %c0_53 = arith.constant 0 : index
    %187 = vector.load %arg4[%186, %c0_52, %c0_53] : memref<8x8x128xf32, #tpu.memory_space<vmem>>, vector<1x8x128xf32>
    %188 = vector.shape_cast %187 : vector<1x8x128xf32> to vector<8x128xf32>
    %189 = vector.shape_cast %185 : vector<8x128xf32> to vector<1x8x128xf32>
    tpu.vector_store %arg4[%186, %c0_52, %c0_53], %189 {strides = array<i32>} : memref<8x8x128xf32, #tpu.memory_space<vmem>>, vector<1x8x128xf32>,
    %c5_i32 = arith.constant 5 : i32
    %c0_54 = arith.constant 0 : index
    %c0_55 = arith.constant 0 : index
    %190 = vector.load %arg7[%c0_54, %c0_55] : memref<128x512xbf16, #tpu.memory_space<vmem>>, vector<128x512xbf16>
    %191 = arith.index_cast %c5_i32 : i32 to index
    %c0_56 = arith.constant 0 : index
    %c0_57 = arith.constant 0 : index
    %192 = vector.load %arg2[%191, %c0_56, %c0_57] : memref<8x8x512xbf16, #tpu.memory_space<vmem>>, vector<1x8x512xbf16>
    %193 = vector.shape_cast %192 : vector<1x8x512xbf16> to vector<8x512xbf16>
    %194 = arith.extf %193 : vector<8x512xbf16> to vector<8x512xf32>
    %195 = arith.truncf %185 : vector<8x128xf32> to vector<8x128xbf16>
    %cst_58 = arith.constant dense<0.000000e+00> : vector<8x512xf32>
    %196 = tpu.matmul %195, %190, %cst_58 {dimension_numbers = #tpu.dot_dimension_numbers<[1], [0], [0], [1], [0, 0, 1, 1], [], []>} : vector<8x128xbf16>, vector<128x512xbf16>, vector<8x512xf32> -> vector<8x512xf32>
    %197 = arith.addf %194, %196 : vector<8x512xf32>
    %198 = vector.extract_strided_slice %197 {offsets = [0, 0], sizes = [8, 128], strides = [1, 1]} : vector<8x512xf32> to vector<8x128xf32>
    %199 = arith.negf %198 : vector<8x128xf32>
    %200 = math.exp %199 : vector<8x128xf32>
    %cst_59 = arith.constant 1.000000e+00 : f32
    %201 = vector.broadcast %cst_59 : f32 to vector<8x128xf32>
    %202 = arith.addf %201, %200 : vector<8x128xf32>
    %203 = arith.divf %201, %202 : vector<8x128xf32>
    %204 = vector.extract_strided_slice %197 {offsets = [0, 128], sizes = [8, 128], strides = [1, 1]} : vector<8x512xf32> to vector<8x128xf32>
    %205 = arith.negf %204 : vector<8x128xf32>
    %206 = math.exp %205 : vector<8x128xf32>
    %cst_60 = arith.constant 1.000000e+00 : f32
    %207 = vector.broadcast %cst_60 : f32 to vector<8x128xf32>
    %208 = arith.addf %207, %206 : vector<8x128xf32>
    %209 = arith.divf %207, %208 : vector<8x128xf32>
    %210 = vector.extract_strided_slice %197 {offsets = [0, 256], sizes = [8, 128], strides = [1, 1]} : vector<8x512xf32> to vector<8x128xf32>
    %211 = math.tanh %210 : vector<8x128xf32>
    %212 = vector.extract_strided_slice %197 {offsets = [0, 384], sizes = [8, 128], strides = [1, 1]} : vector<8x512xf32> to vector<8x128xf32>
    %213 = arith.negf %212 : vector<8x128xf32>
    %214 = math.exp %213 : vector<8x128xf32>
    %cst_61 = arith.constant 1.000000e+00 : f32
    %215 = vector.broadcast %cst_61 : f32 to vector<8x128xf32>
    %216 = arith.addf %215, %214 : vector<8x128xf32>
    %217 = arith.divf %215, %216 : vector<8x128xf32>
    %218 = arith.mulf %209, %183 : vector<8x128xf32>
    %219 = arith.mulf %203, %211 : vector<8x128xf32>
    %220 = arith.addf %218, %219 : vector<8x128xf32>
    %221 = math.tanh %220 : vector<8x128xf32>
    %222 = arith.mulf %217, %221 : vector<8x128xf32>
    %223 = arith.index_cast %c5_i32 : i32 to index
    %c0_62 = arith.constant 0 : index
    %c0_63 = arith.constant 0 : index
    %224 = vector.load %arg4[%223, %c0_62, %c0_63] : memref<8x8x128xf32, #tpu.memory_space<vmem>>, vector<1x8x128xf32>
    %225 = vector.shape_cast %224 : vector<1x8x128xf32> to vector<8x128xf32>
    %226 = vector.shape_cast %222 : vector<8x128xf32> to vector<1x8x128xf32>
    tpu.vector_store %arg4[%223, %c0_62, %c0_63], %226 {strides = array<i32>} : memref<8x8x128xf32, #tpu.memory_space<vmem>>, vector<1x8x128xf32>,
    %c6_i32 = arith.constant 6 : i32
    %c0_64 = arith.constant 0 : index
    %c0_65 = arith.constant 0 : index
    %227 = vector.load %arg7[%c0_64, %c0_65] : memref<128x512xbf16, #tpu.memory_space<vmem>>, vector<128x512xbf16>
    %228 = arith.index_cast %c6_i32 : i32 to index
    %c0_66 = arith.constant 0 : index
    %c0_67 = arith.constant 0 : index
    %229 = vector.load %arg2[%228, %c0_66, %c0_67] : memref<8x8x512xbf16, #tpu.memory_space<vmem>>, vector<1x8x512xbf16>
    %230 = vector.shape_cast %229 : vector<1x8x512xbf16> to vector<8x512xbf16>
    %231 = arith.extf %230 : vector<8x512xbf16> to vector<8x512xf32>
    %232 = arith.truncf %222 : vector<8x128xf32> to vector<8x128xbf16>
    %cst_68 = arith.constant dense<0.000000e+00> : vector<8x512xf32>
    %233 = tpu.matmul %232, %227, %cst_68 {dimension_numbers = #tpu.dot_dimension_numbers<[1], [0], [0], [1], [0, 0, 1, 1], [], []>} : vector<8x128xbf16>, vector<128x512xbf16>, vector<8x512xf32> -> vector<8x512xf32>
    %234 = arith.addf %231, %233 : vector<8x512xf32>
    %235 = vector.extract_strided_slice %234 {offsets = [0, 0], sizes = [8, 128], strides = [1, 1]} : vector<8x512xf32> to vector<8x128xf32>
    %236 = arith.negf %235 : vector<8x128xf32>
    %237 = math.exp %236 : vector<8x128xf32>
    %cst_69 = arith.constant 1.000000e+00 : f32
    %238 = vector.broadcast %cst_69 : f32 to vector<8x128xf32>
    %239 = arith.addf %238, %237 : vector<8x128xf32>
    %240 = arith.divf %238, %239 : vector<8x128xf32>
    %241 = vector.extract_strided_slice %234 {offsets = [0, 128], sizes = [8, 128], strides = [1, 1]} : vector<8x512xf32> to vector<8x128xf32>
    %242 = arith.negf %241 : vector<8x128xf32>
    %243 = math.exp %242 : vector<8x128xf32>
    %cst_70 = arith.constant 1.000000e+00 : f32
    %244 = vector.broadcast %cst_70 : f32 to vector<8x128xf32>
    %245 = arith.addf %244, %243 : vector<8x128xf32>
    %246 = arith.divf %244, %245 : vector<8x128xf32>
    %247 = vector.extract_strided_slice %234 {offsets = [0, 256], sizes = [8, 128], strides = [1, 1]} : vector<8x512xf32> to vector<8x128xf32>
    %248 = math.tanh %247 : vector<8x128xf32>
    %249 = vector.extract_strided_slice %234 {offsets = [0, 384], sizes = [8, 128], strides = [1, 1]} : vector<8x512xf32> to vector<8x128xf32>
    %250 = arith.negf %249 : vector<8x128xf32>
    %251 = math.exp %250 : vector<8x128xf32>
    %cst_71 = arith.constant 1.000000e+00 : f32
    %252 = vector.broadcast %cst_71 : f32 to vector<8x128xf32>
    %253 = arith.addf %252, %251 : vector<8x128xf32>
    %254 = arith.divf %252, %253 : vector<8x128xf32>
    %255 = arith.mulf %246, %220 : vector<8x128xf32>
    %256 = arith.mulf %240, %248 : vector<8x128xf32>
    %257 = arith.addf %255, %256 : vector<8x128xf32>
    %258 = math.tanh %257 : vector<8x128xf32>
    %259 = arith.mulf %254, %258 : vector<8x128xf32>
    %260 = arith.index_cast %c6_i32 : i32 to index
    %c0_72 = arith.constant 0 : index
    %c0_73 = arith.constant 0 : index
    %261 = vector.load %arg4[%260, %c0_72, %c0_73] : memref<8x8x128xf32, #tpu.memory_space<vmem>>, vector<1x8x128xf32>
    %262 = vector.shape_cast %261 : vector<1x8x128xf32> to vector<8x128xf32>
    %263 = vector.shape_cast %259 : vector<8x128xf32> to vector<1x8x128xf32>
    tpu.vector_store %arg4[%260, %c0_72, %c0_73], %263 {strides = array<i32>} : memref<8x8x128xf32, #tpu.memory_space<vmem>>, vector<1x8x128xf32>,
    %c7_i32 = arith.constant 7 : i32
    %c0_74 = arith.constant 0 : index
    %c0_75 = arith.constant 0 : index
    %264 = vector.load %arg7[%c0_74, %c0_75] : memref<128x512xbf16, #tpu.memory_space<vmem>>, vector<128x512xbf16>
    %265 = arith.index_cast %c7_i32 : i32 to index
    %c0_76 = arith.constant 0 : index
    %c0_77 = arith.constant 0 : index
    %266 = vector.load %arg2[%265, %c0_76, %c0_77] : memref<8x8x512xbf16, #tpu.memory_space<vmem>>, vector<1x8x512xbf16>
    %267 = vector.shape_cast %266 : vector<1x8x512xbf16> to vector<8x512xbf16>
    %268 = arith.extf %267 : vector<8x512xbf16> to vector<8x512xf32>
    %269 = arith.truncf %259 : vector<8x128xf32> to vector<8x128xbf16>
    %cst_78 = arith.constant dense<0.000000e+00> : vector<8x512xf32>
    %270 = tpu.matmul %269, %264, %cst_78 {dimension_numbers = #tpu.dot_dimension_numbers<[1], [0], [0], [1], [0, 0, 1, 1], [], []>} : vector<8x128xbf16>, vector<128x512xbf16>, vector<8x512xf32> -> vector<8x512xf32>
    %271 = arith.addf %268, %270 : vector<8x512xf32>
    %272 = vector.extract_strided_slice %271 {offsets = [0, 0], sizes = [8, 128], strides = [1, 1]} : vector<8x512xf32> to vector<8x128xf32>
    %273 = arith.negf %272 : vector<8x128xf32>
    %274 = math.exp %273 : vector<8x128xf32>
    %cst_79 = arith.constant 1.000000e+00 : f32
    %275 = vector.broadcast %cst_79 : f32 to vector<8x128xf32>
    %276 = arith.addf %275, %274 : vector<8x128xf32>
    %277 = arith.divf %275, %276 : vector<8x128xf32>
    %278 = vector.extract_strided_slice %271 {offsets = [0, 128], sizes = [8, 128], strides = [1, 1]} : vector<8x512xf32> to vector<8x128xf32>
    %279 = arith.negf %278 : vector<8x128xf32>
    %280 = math.exp %279 : vector<8x128xf32>
    %cst_80 = arith.constant 1.000000e+00 : f32
    %281 = vector.broadcast %cst_80 : f32 to vector<8x128xf32>
    %282 = arith.addf %281, %280 : vector<8x128xf32>
    %283 = arith.divf %281, %282 : vector<8x128xf32>
    %284 = vector.extract_strided_slice %271 {offsets = [0, 256], sizes = [8, 128], strides = [1, 1]} : vector<8x512xf32> to vector<8x128xf32>
    %285 = math.tanh %284 : vector<8x128xf32>
    %286 = vector.extract_strided_slice %271 {offsets = [0, 384], sizes = [8, 128], strides = [1, 1]} : vector<8x512xf32> to vector<8x128xf32>
    %287 = arith.negf %286 : vector<8x128xf32>
    %288 = math.exp %287 : vector<8x128xf32>
    %cst_81 = arith.constant 1.000000e+00 : f32
    %289 = vector.broadcast %cst_81 : f32 to vector<8x128xf32>
    %290 = arith.addf %289, %288 : vector<8x128xf32>
    %291 = arith.divf %289, %290 : vector<8x128xf32>
    %292 = arith.mulf %283, %257 : vector<8x128xf32>
    %293 = arith.mulf %277, %285 : vector<8x128xf32>
    %294 = arith.addf %292, %293 : vector<8x128xf32>
    %295 = math.tanh %294 : vector<8x128xf32>
    %296 = arith.mulf %291, %295 : vector<8x128xf32>
    %297 = arith.index_cast %c7_i32 : i32 to index
    %c0_82 = arith.constant 0 : index
    %c0_83 = arith.constant 0 : index
    %298 = vector.load %arg4[%297, %c0_82, %c0_83] : memref<8x8x128xf32, #tpu.memory_space<vmem>>, vector<1x8x128xf32>
    %299 = vector.shape_cast %298 : vector<1x8x128xf32> to vector<8x128xf32>
    %300 = vector.shape_cast %296 : vector<8x128xf32> to vector<1x8x128xf32>
    tpu.vector_store %arg4[%297, %c0_82, %c0_83], %300 {strides = array<i32>} : memref<8x8x128xf32, #tpu.memory_space<vmem>>, vector<1x8x128xf32>,
    %c8_i32 = arith.constant 8 : i32
    %c0_84 = arith.constant 0 : index
    %c0_85 = arith.constant 0 : index
    %301 = vector.load %arg9[%c0_84, %c0_85] : memref<8x128xf32, #tpu.memory_space<vmem>>, vector<8x128xf32>
    tpu.vector_store %arg9[%c0_84, %c0_85], %296 {strides = array<i32>} : memref<8x128xf32, #tpu.memory_space<vmem>>, vector<8x128xf32>,
    %c0_86 = arith.constant 0 : index
    %c0_87 = arith.constant 0 : index
    %302 = vector.load %arg10[%c0_86, %c0_87] : memref<8x128xf32, #tpu.memory_space<vmem>>, vector<8x128xf32>
    tpu.vector_store %arg10[%c0_86, %c0_87], %294 {strides = array<i32>} : memref<8x128xf32, #tpu.memory_space<vmem>>, vector<8x128xf32>,
    %c0_i32_88 = arith.constant 0 : i32
    %303 = arith.cmpi eq, %arg1, %c0_i32_88 : i32
    %304 = arith.extui %303 : i1 to i32
    %c0_i32_89 = arith.constant 0 : i32
    %305 = arith.cmpi ne, %304, %c0_i32_89 : i32
    scf.if %305 {
      %c0_90 = arith.constant 0 : index
      %c0_91 = arith.constant 0 : index
      %c0_92 = arith.constant 0 : index
      %306 = vector.load %arg5[%c0_90, %c0_91, %c0_92] : memref<1x8x128xf32, #tpu.memory_space<vmem>>, vector<1x8x128xf32>
      %307 = vector.shape_cast %306 : vector<1x8x128xf32> to vector<8x128xf32>
      %308 = vector.shape_cast %296 : vector<8x128xf32> to vector<1x8x128xf32>
      tpu.vector_store %arg5[%c0_90, %c0_91, %c0_92], %308 {strides = array<i32>} : memref<1x8x128xf32, #tpu.memory_space<vmem>>, vector<1x8x128xf32>,
      %c0_93 = arith.constant 0 : index
      %c0_94 = arith.constant 0 : index
      %c0_95 = arith.constant 0 : index
      %309 = vector.load %arg6[%c0_93, %c0_94, %c0_95] : memref<1x8x128xf32, #tpu.memory_space<vmem>>, vector<1x8x128xf32>
      %310 = vector.shape_cast %309 : vector<1x8x128xf32> to vector<8x128xf32>
      %311 = vector.shape_cast %294 : vector<8x128xf32> to vector<1x8x128xf32>
      tpu.vector_store %arg6[%c0_93, %c0_94, %c0_95], %311 {strides = array<i32>} : memref<1x8x128xf32, #tpu.memory_space<vmem>>, vector<1x8x128xf32>,
    } else {
    }
    return
  }
  func.func @transform_0(%arg0: i32, %arg1: i32) -> (i32, i32, i32) {
    %c0_i32 = arith.constant 0 : i32
    %c0_i32_0 = arith.constant 0 : i32
    return %arg1, %arg0, %c0_i32 : i32, i32, i32
  }
  func.func @transform_2(%arg0: i32, %arg1: i32) -> (i32, i32, i32) {
    %c0_i32 = arith.constant 0 : i32
    %c0_i32_0 = arith.constant 0 : i32
    return %arg1, %arg0, %c0_i32 : i32, i32, i32
  }
  func.func @transform_3(%arg0: i32, %arg1: i32) -> (i32, i32, i32) {
    %c0_i32 = arith.constant 0 : i32
    %c0_i32_0 = arith.constant 0 : i32
    %c0_i32_1 = arith.constant 0 : i32
    return %c0_i32, %arg0, %c0_i32_0 : i32, i32, i32
  }
  func.func @transform_4(%arg0: i32, %arg1: i32) -> (i32, i32, i32) {
    %c0_i32 = arith.constant 0 : i32
    %c0_i32_0 = arith.constant 0 : i32
    %c0_i32_1 = arith.constant 0 : i32
    return %c0_i32, %arg0, %c0_i32_0 : i32, i32, i32
  }
}

</mosaic_0001>

<llo_original>
// kernel: encoder_rnn_forward.1
$region0: #{encoder_rnn_forward.1}
  #allocation0 [shape = 'u32[]', space=smem, size = 0x4, offset = 0x4, fixed_abs, tag = 'smem constant byte address 0x4 - core index']
  #allocation1 [shape = 'u32[144,128]{1,0:T(1,128)}', space=vmem, size = 0x12000, scoped, tag = 'internal scratch']
  #allocation2 [shape = 'bf16[128,512]{1,0:T(16,128)(2,1)}', space=vmem, size = 0x20000, scoped, tag = 'scratch operand']
  #allocation3 [shape = 's32[1]{0}', space=sflag, size = 0x4, scoped, tag = 'scratch operand']
  #allocation4 [shape = 'f32[8,128]{1,0:T(8,128)}', space=vmem, size = 0x1000, scoped, tag = 'scratch operand']
  #allocation5 [shape = 'f32[8,128]{1,0:T(8,128)}', space=vmem, size = 0x1000, scoped, tag = 'scratch operand']
  #allocation6 [shape = 's32[]', space=sflag, size = 0x4, offset = 0, fixed_abs, tag = 'sflag constant byte address 0x0 - dummy sync flag']
  %s0 = inlined_call_operand.vmem [shape: bf16[8,8,512], index: 0, kind: input, shape index: {}]
  %s1 = inlined_call_operand.vmem [shape: bf16[128,512], index: 1, kind: input, shape index: {}]
  %s2 = inlined_call_operand.vmem [shape: f32[8,8,128], index: 2, kind: output, shape index: {0}]
  %s3 = inlined_call_operand.vmem [shape: f32[1,8,128], index: 3, kind: output, shape index: {1}]
  %s4 = inlined_call_operand.vmem [shape: f32[1,8,128], index: 4, kind: output, shape index: {2}]
  %5 = xla_tuple %s2, %s3, %s4
  %s6 = sld [smem:[#allocation0]]
  $region75: #{encoder_rnn_forward.1} parent=0
    _
  %s8 = ssub.s32 1, %s6
  %s9 = scalar_select 0, %s8, %s6
  // Predicated region
  $region2: #{encoder_rnn_forward.1} parent=0 // pred_check
    _
  $region3: #{encoder_rnn_forward.1} parent=0 // pred_check_branch
    %11 = sbr.rel (0) target = $region5
  $region4: #{encoder_rnn_forward.1} parent=0 // pred_region
    _
  $region5: #{encoder_rnn_forward.1} parent=0 // pred_fallthru
    _
  %p13 = scmp.eq.s32.totalorder 0, 0
  // Predicated region
  $region6: #{encoder_rnn_forward.1} parent=0 // pred_check
    %p14 = pneg %p13
  $region7: #{encoder_rnn_forward.1} parent=0 // pred_check_branch
    %16 = sbr.rel (%p14) target = $region9
  $region8: #{encoder_rnn_forward.1} parent=0 // pred_region
    %p18 = scmp.lt.u32.totalorder 4, 8
    %p19 = pneg %p18
    // Predicated region
    $region10: #{encoder_rnn_forward.1} parent=8 // pred_check
      _
    $region11: #{encoder_rnn_forward.1} parent=8 // pred_check_branch
      %21 = sbr.rel (%p18) target = $region13
    $region12: #{encoder_rnn_forward.1} parent=8 // pred_region
      %s162 = sand.u32 4, 7
      %p163 = scmp.eq.s32.totalorder %s162, 0
      %p164 = pneg %p163
      // Predicated region
      $region25: #{encoder_rnn_forward.1} parent=12 // pred_check
        _
      $region26: #{encoder_rnn_forward.1} parent=12 // pred_check_branch
        %166 = sbr.rel (%p163) target = $region28
      $region27: #{encoder_rnn_forward.1} parent=12 // pred_region
        %s167 = sand.u32 4, 7
        %s168 = ssub.s32 4, %s167
        %s169 = scalar_lea.vmem %s1, %s168
        %s170 = ssub.s32 4, %s167
        %s171 = scalar_lea.vmem [#allocation2], %s170
        loop: start=0, step=1, limit=1
        $region29: #{encoder_rnn_forward.1} parent=27 // loop_pre_header
          _
        $region30: #{encoder_rnn_forward.1} parent=27 // loop_header
          %s173 = sphi 0, %s177
          %p174 = scmp.ge.s32.totalorder %s173, 1
          %s178 = sphi %s1, %s1
          %s179 = sphi [#allocation2], [#allocation2]
        $region31: #{encoder_rnn_forward.1} parent=27 // loop_header_branch
          %176 = sbr.rel (%p174) target = $region35
        $region32: #{encoder_rnn_forward.1} parent=27 // loop_body
          _
        $region33: #{encoder_rnn_forward.1} parent=27 // loop_footer
          %s177 = sadd.s32 1, %s173
        $region34: #{encoder_rnn_forward.1} parent=27 // loop_footer_branch
          %172 = sbr.rel target = $region30
        $region35: #{encoder_rnn_forward.1} parent=27 // loop_exit
          _
        %s180 = sshllo.u32 0, %s167
        loop: start=0, step=1, limit=1
        $region36: #{encoder_rnn_forward.1} parent=27 // loop_pre_header
          _
        $region37: #{encoder_rnn_forward.1} parent=27 // loop_header
          %s182 = sphi 0, %s186
          %p183 = scmp.ge.s32.totalorder %s182, 1
          %s187 = sphi %s169, %s169
          %s188 = sphi %s171, %s171
        $region38: #{encoder_rnn_forward.1} parent=27 // loop_header_branch
          %185 = sbr.rel (%p183) target = $region42
        $region39: #{encoder_rnn_forward.1} parent=27 // loop_body
          %v189 = vld [vmem:[%s187] sm:%s180]
          %190 = vst [vmem:[%s188] sm:%s180] %v189
          %v191 = vld [vmem:[%s187 + $0x10] sm:%s180]
          %192 = vst [vmem:[%s188 + $0x4] sm:%s180] %v191
          %v193 = vld [vmem:[%s187 + $0x4] sm:%s180]
          %194 = vst [vmem:[%s188 + $0x8] sm:%s180] %v193
          %v195 = vld [vmem:[%s187 + $0x14] sm:%s180]
          %196 = vst [vmem:[%s188 + $0xc] sm:%s180] %v195
          %v197 = vld [vmem:[%s187 + $0x8] sm:%s180]
          %198 = vst [vmem:[%s188 + $0x10] sm:%s180] %v197
          %v199 = vld [vmem:[%s187 + $0x18] sm:%s180]
          %200 = vst [vmem:[%s188 + $0x14] sm:%s180] %v199
          %v201 = vld [vmem:[%s187 + $0xc] sm:%s180]
          %202 = vst [vmem:[%s188 + $0x18] sm:%s180] %v201
          %v203 = vld [vmem:[%s187 + $0x1c] sm:%s180]
          %204 = vst [vmem:[%s188 + $0x1c] sm:%s180] %v203
          %v205 = vld [vmem:[%s187 + $0x20] sm:%s180]
          %206 = vst [vmem:[%s188 + $0x20] sm:%s180] %v205
          %v207 = vld [vmem:[%s187 + $0x30] sm:%s180]
          %208 = vst [vmem:[%s188 + $0x24] sm:%s180] %v207
          %v209 = vld [vmem:[%s187 + $0x24] sm:%s180]
          %210 = vst [vmem:[%s188 + $0x28] sm:%s180] %v209
          %v211 = vld [vmem:[%s187 + $0x34] sm:%s180]
          %212 = vst [vmem:[%s188 + $0x2c] sm:%s180] %v211
          %v213 = vld [vmem:[%s187 + $0x28] sm:%s180]
          %214 = vst [vmem:[%s188 + $0x30] sm:%s180] %v213
          %v215 = vld [vmem:[%s187 + $0x38] sm:%s180]
          %216 = vst [vmem:[%s188 + $0x34] sm:%s180] %v215
          %v217 = vld [vmem:[%s187 + $0x2c] sm:%s180]
          %218 = vst [vmem:[%s188 + $0x38] sm:%s180] %v217
          %v219 = vld [vmem:[%s187 + $0x3c] sm:%s180]
          %220 = vst [vmem:[%s188 + $0x3c] sm:%s180] %v219
          %v221 = vld [vmem:[%s187 + $0x40] sm:%s180]
          %222 = vst [vmem:[%s188 + $0x40] sm:%s180] %v221
          %v223 = vld [vmem:[%s187 + $0x50] sm:%s180]
          %224 = vst [vmem:[%s188 + $0x44] sm:%s180] %v223
          %v225 = vld [vmem:[%s187 + $0x44] sm:%s180]
          %226 = vst [vmem:[%s188 + $0x48] sm:%s180] %v225
          %v227 = vld [vmem:[%s187 + $0x54] sm:%s180]
          %228 = vst [vmem:[%s188 + $0x4c] sm:%s180] %v227
          %v229 = vld [vmem:[%s187 + $0x48] sm:%s180]
          %230 = vst [vmem:[%s188 + $0x50] sm:%s180] %v229
          %v231 = vld [vmem:[%s187 + $0x58] sm:%s180]
          %232 = vst [vmem:[%s188 + $0x54] sm:%s180] %v231
          %v233 = vld [vmem:[%s187 + $0x4c] sm:%s180]
          %234 = vst [vmem:[%s188 + $0x58] sm:%s180] %v233
          %v235 = vld [vmem:[%s187 + $0x5c] sm:%s180]
          %236 = vst [vmem:[%s188 + $0x5c] sm:%s180] %v235
          %v237 = vld [vmem:[%s187 + $0x60] sm:%s180]
          %238 = vst [vmem:[%s188 + $0x60] sm:%s180] %v237
          %v239 = vld [vmem:[%s187 + $0x70] sm:%s180]
          %240 = vst [vmem:[%s188 + $0x64] sm:%s180] %v239
          %v241 = vld [vmem:[%s187 + $0x64] sm:%s180]
          %242 = vst [vmem:[%s188 + $0x68] sm:%s180] %v241
          %v243 = vld [vmem:[%s187 + $0x74] sm:%s180]
          %244 = vst [vmem:[%s188 + $0x6c] sm:%s180] %v243
          %v245 = vld [vmem:[%s187 + $0x68] sm:%s180]
          %246 = vst [vmem:[%s188 + $0x70] sm:%s180] %v245
          %v247 = vld [vmem:[%s187 + $0x78] sm:%s180]
          %248 = vst [vmem:[%s188 + $0x74] sm:%s180] %v247
          %v249 = vld [vmem:[%s187 + $0x6c] sm:%s180]
          %250 = vst [vmem:[%s188 + $0x78] sm:%s180] %v249
          %v251 = vld [vmem:[%s187 + $0x7c] sm:%s180]
          %252 = vst [vmem:[%s188 + $0x7c] sm:%s180] %v251
          %v253 = vld [vmem:[%s187 + $0x80] sm:%s180]
          %254 = vst [vmem:[%s188 + $0x80] sm:%s180] %v253
          %v255 = vld [vmem:[%s187 + $0x90] sm:%s180]
          %256 = vst [vmem:[%s188 + $0x84] sm:%s180] %v255
          %v257 = vld [vmem:[%s187 + $0x84] sm:%s180]
          %258 = vst [vmem:[%s188 + $0x88] sm:%s180] %v257
          %v259 = vld [vmem:[%s187 + $0x94] sm:%s180]
          %260 = vst [vmem:[%s188 + $0x8c] sm:%s180] %v259
          %v261 = vld [vmem:[%s187 + $0x88] sm:%s180]
          %262 = vst [vmem:[%s188 + $0x90] sm:%s180] %v261
          %v263 = vld [vmem:[%s187 + $0x98] sm:%s180]
          %264 = vst [vmem:[%s188 + $0x94] sm:%s180] %v263
          %v265 = vld [vmem:[%s187 + $0x8c] sm:%s180]
          %266 = vst [vmem:[%s188 + $0x98] sm:%s180] %v265
          %v267 = vld [vmem:[%s187 + $0x9c] sm:%s180]
          %268 = vst [vmem:[%s188 + $0x9c] sm:%s180] %v267
          %v269 = vld [vmem:[%s187 + $0xa0] sm:%s180]
          %270 = vst [vmem:[%s188 + $0xa0] sm:%s180] %v269
          %v271 = vld [vmem:[%s187 + $0xb0] sm:%s180]
          %272 = vst [vmem:[%s188 + $0xa4] sm:%s180] %v271
          %v273 = vld [vmem:[%s187 + $0xa4] sm:%s180]
          %274 = vst [vmem:[%s188 + $0xa8] sm:%s180] %v273
          %v275 = vld [vmem:[%s187 + $0xb4] sm:%s180]
          %276 = vst [vmem:[%s188 + $0xac] sm:%s180] %v275
          %v277 = vld [vmem:[%s187 + $0xa8] sm:%s180]
          %278 = vst [vmem:[%s188 + $0xb0] sm:%s180] %v277
          %v279 = vld [vmem:[%s187 + $0xb8] sm:%s180]
          %280 = vst [vmem:[%s188 + $0xb4] sm:%s180] %v279
          %v281 = vld [vmem:[%s187 + $0xac] sm:%s180]
          %282 = vst [vmem:[%s188 + $0xb8] sm:%s180] %v281
          %v283 = vld [vmem:[%s187 + $0xbc] sm:%s180]
          %284 = vst [vmem:[%s188 + $0xbc] sm:%s180] %v283
          %v285 = vld [vmem:[%s187 + $0xc0] sm:%s180]
          %286 = vst [vmem:[%s188 + $0xc0] sm:%s180] %v285
          %v287 = vld [vmem:[%s187 + $0xd0] sm:%s180]
          %288 = vst [vmem:[%s188 + $0xc4] sm:%s180] %v287
          %v289 = vld [vmem:[%s187 + $0xc4] sm:%s180]
          %290 = vst [vmem:[%s188 + $0xc8] sm:%s180] %v289
          %v291 = vld [vmem:[%s187 + $0xd4] sm:%s180]
          %292 = vst [vmem:[%s188 + $0xcc] sm:%s180] %v291
          %v293 = vld [vmem:[%s187 + $0xc8] sm:%s180]
          %294 = vst [vmem:[%s188 + $0xd0] sm:%s180] %v293
          %v295 = vld [vmem:[%s187 + $0xd8] sm:%s180]
          %296 = vst [vmem:[%s188 + $0xd4] sm:%s180] %v295
          %v297 = vld [vmem:[%s187 + $0xcc] sm:%s180]
          %298 = vst [vmem:[%s188 + $0xd8] sm:%s180] %v297
          %v299 = vld [vmem:[%s187 + $0xdc] sm:%s180]
          %300 = vst [vmem:[%s188 + $0xdc] sm:%s180] %v299
          %v301 = vld [vmem:[%s187 + $0xe0] sm:%s180]
          %302 = vst [vmem:[%s188 + $0xe0] sm:%s180] %v301
          %v303 = vld [vmem:[%s187 + $0xf0] sm:%s180]
          %304 = vst [vmem:[%s188 + $0xe4] sm:%s180] %v303
          %v305 = vld [vmem:[%s187 + $0xe4] sm:%s180]
          %306 = vst [vmem:[%s188 + $0xe8] sm:%s180] %v305
          %v307 = vld [vmem:[%s187 + $0xf4] sm:%s180]
          %308 = vst [vmem:[%s188 + $0xec] sm:%s180] %v307
          %v309 = vld [vmem:[%s187 + $0xe8] sm:%s180]
          %310 = vst [vmem:[%s188 + $0xf0] sm:%s180] %v309
          %v311 = vld [vmem:[%s187 + $0xf8] sm:%s180]
          %312 = vst [vmem:[%s188 + $0xf4] sm:%s180] %v311
          %v313 = vld [vmem:[%s187 + $0xec] sm:%s180]
          %314 = vst [vmem:[%s188 + $0xf8] sm:%s180] %v313
          %v315 = vld [vmem:[%s187 + $0xfc] sm:%s180]
          %316 = vst [vmem:[%s188 + $0xfc] sm:%s180] %v315
        $region40: #{encoder_rnn_forward.1} parent=27 // loop_footer
          %s186 = sadd.s32 1, %s182
        $region41: #{encoder_rnn_forward.1} parent=27 // loop_footer_branch
          %181 = sbr.rel target = $region37
        $region42: #{encoder_rnn_forward.1} parent=27 // loop_exit
          _
      $region28: #{encoder_rnn_forward.1} parent=12 // pred_fallthru
        _
    $region13: #{encoder_rnn_forward.1} parent=8 // pred_fallthru
      _
    // Predicated region
    $region14: #{encoder_rnn_forward.1} parent=8 // pred_check
      %p22 = pneg %p18
    $region15: #{encoder_rnn_forward.1} parent=8 // pred_check_branch
      %24 = sbr.rel (%p22) target = $region17
    $region16: #{encoder_rnn_forward.1} parent=8 // pred_region
      %s25 = sshllo.u32 0, 4
      loop: start=0, step=1, limit=1
      $region18: #{encoder_rnn_forward.1} parent=16 // loop_pre_header
        _
      $region19: #{encoder_rnn_forward.1} parent=16 // loop_header
        %s27 = sphi 0, %s31
        %p28 = scmp.ge.s32.totalorder %s27, 1
        %s32 = sphi %s1, %s1
        %s33 = sphi [#allocation2], [#allocation2]
      $region20: #{encoder_rnn_forward.1} parent=16 // loop_header_branch
        %30 = sbr.rel (%p28) target = $region24
      $region21: #{encoder_rnn_forward.1} parent=16 // loop_body
        %v34 = vld [vmem:[%s32] sm:%s25]
        %35 = vst [vmem:[%s33] sm:%s25] %v34
        %v36 = vld [vmem:[%s32 + $0x10] sm:%s25]
        %37 = vst [vmem:[%s33 + $0x4] sm:%s25] %v36
        %v38 = vld [vmem:[%s32 + $0x4] sm:%s25]
        %39 = vst [vmem:[%s33 + $0x8] sm:%s25] %v38
        %v40 = vld [vmem:[%s32 + $0x14] sm:%s25]
        %41 = vst [vmem:[%s33 + $0xc] sm:%s25] %v40
        %v42 = vld [vmem:[%s32 + $0x8] sm:%s25]
        %43 = vst [vmem:[%s33 + $0x10] sm:%s25] %v42
        %v44 = vld [vmem:[%s32 + $0x18] sm:%s25]
        %45 = vst [vmem:[%s33 + $0x14] sm:%s25] %v44
        %v46 = vld [vmem:[%s32 + $0xc] sm:%s25]
        %47 = vst [vmem:[%s33 + $0x18] sm:%s25] %v46
        %v48 = vld [vmem:[%s32 + $0x1c] sm:%s25]
        %49 = vst [vmem:[%s33 + $0x1c] sm:%s25] %v48
        %v50 = vld [vmem:[%s32 + $0x20] sm:%s25]
        %51 = vst [vmem:[%s33 + $0x20] sm:%s25] %v50
        %v52 = vld [vmem:[%s32 + $0x30] sm:%s25]
        %53 = vst [vmem:[%s33 + $0x24] sm:%s25] %v52
        %v54 = vld [vmem:[%s32 + $0x24] sm:%s25]
        %55 = vst [vmem:[%s33 + $0x28] sm:%s25] %v54
        %v56 = vld [vmem:[%s32 + $0x34] sm:%s25]
        %57 = vst [vmem:[%s33 + $0x2c] sm:%s25] %v56
        %v58 = vld [vmem:[%s32 + $0x28] sm:%s25]
        %59 = vst [vmem:[%s33 + $0x30] sm:%s25] %v58
        %v60 = vld [vmem:[%s32 + $0x38] sm:%s25]
        %61 = vst [vmem:[%s33 + $0x34] sm:%s25] %v60
        %v62 = vld [vmem:[%s32 + $0x2c] sm:%s25]
        %63 = vst [vmem:[%s33 + $0x38] sm:%s25] %v62
        %v64 = vld [vmem:[%s32 + $0x3c] sm:%s25]
        %65 = vst [vmem:[%s33 + $0x3c] sm:%s25] %v64
        %v66 = vld [vmem:[%s32 + $0x40] sm:%s25]
        %67 = vst [vmem:[%s33 + $0x40] sm:%s25] %v66
        %v68 = vld [vmem:[%s32 + $0x50] sm:%s25]
        %69 = vst [vmem:[%s33 + $0x44] sm:%s25] %v68
        %v70 = vld [vmem:[%s32 + $0x44] sm:%s25]
        %71 = vst [vmem:[%s33 + $0x48] sm:%s25] %v70
        %v72 = vld [vmem:[%s32 + $0x54] sm:%s25]
        %73 = vst [vmem:[%s33 + $0x4c] sm:%s25] %v72
        %v74 = vld [vmem:[%s32 + $0x48] sm:%s25]
        %75 = vst [vmem:[%s33 + $0x50] sm:%s25] %v74
        %v76 = vld [vmem:[%s32 + $0x58] sm:%s25]
        %77 = vst [vmem:[%s33 + $0x54] sm:%s25] %v76
        %v78 = vld [vmem:[%s32 + $0x4c] sm:%s25]
        %79 = vst [vmem:[%s33 + $0x58] sm:%s25] %v78
        %v80 = vld [vmem:[%s32 + $0x5c] sm:%s25]
        %81 = vst [vmem:[%s33 + $0x5c] sm:%s25] %v80
        %v82 = vld [vmem:[%s32 + $0x60] sm:%s25]
        %83 = vst [vmem:[%s33 + $0x60] sm:%s25] %v82
        %v84 = vld [vmem:[%s32 + $0x70] sm:%s25]
        %85 = vst [vmem:[%s33 + $0x64] sm:%s25] %v84
        %v86 = vld [vmem:[%s32 + $0x64] sm:%s25]
        %87 = vst [vmem:[%s33 + $0x68] sm:%s25] %v86
        %v88 = vld [vmem:[%s32 + $0x74] sm:%s25]
        %89 = vst [vmem:[%s33 + $0x6c] sm:%s25] %v88
        %v90 = vld [vmem:[%s32 + $0x68] sm:%s25]
        %91 = vst [vmem:[%s33 + $0x70] sm:%s25] %v90
        %v92 = vld [vmem:[%s32 + $0x78] sm:%s25]
        %93 = vst [vmem:[%s33 + $0x74] sm:%s25] %v92
        %v94 = vld [vmem:[%s32 + $0x6c] sm:%s25]
        %95 = vst [vmem:[%s33 + $0x78] sm:%s25] %v94
        %v96 = vld [vmem:[%s32 + $0x7c] sm:%s25]
        %97 = vst [vmem:[%s33 + $0x7c] sm:%s25] %v96
        %v98 = vld [vmem:[%s32 + $0x80] sm:%s25]
        %99 = vst [vmem:[%s33 + $0x80] sm:%s25] %v98
        %v100 = vld [vmem:[%s32 + $0x90] sm:%s25]
        %101 = vst [vmem:[%s33 + $0x84] sm:%s25] %v100
        %v102 = vld [vmem:[%s32 + $0x84] sm:%s25]
        %103 = vst [vmem:[%s33 + $0x88] sm:%s25] %v102
        %v104 = vld [vmem:[%s32 + $0x94] sm:%s25]
        %105 = vst [vmem:[%s33 + $0x8c] sm:%s25] %v104
        %v106 = vld [vmem:[%s32 + $0x88] sm:%s25]
        %107 = vst [vmem:[%s33 + $0x90] sm:%s25] %v106
        %v108 = vld [vmem:[%s32 + $0x98] sm:%s25]
        %109 = vst [vmem:[%s33 + $0x94] sm:%s25] %v108
        %v110 = vld [vmem:[%s32 + $0x8c] sm:%s25]
        %111 = vst [vmem:[%s33 + $0x98] sm:%s25] %v110
        %v112 = vld [vmem:[%s32 + $0x9c] sm:%s25]
        %113 = vst [vmem:[%s33 + $0x9c] sm:%s25] %v112
        %v114 = vld [vmem:[%s32 + $0xa0] sm:%s25]
        %115 = vst [vmem:[%s33 + $0xa0] sm:%s25] %v114
        %v116 = vld [vmem:[%s32 + $0xb0] sm:%s25]
        %117 = vst [vmem:[%s33 + $0xa4] sm:%s25] %v116
        %v118 = vld [vmem:[%s32 + $0xa4] sm:%s25]
        %119 = vst [vmem:[%s33 + $0xa8] sm:%s25] %v118
        %v120 = vld [vmem:[%s32 + $0xb4] sm:%s25]
        %121 = vst [vmem:[%s33 + $0xac] sm:%s25] %v120
        %v122 = vld [vmem:[%s32 + $0xa8] sm:%s25]
        %123 = vst [vmem:[%s33 + $0xb0] sm:%s25] %v122
        %v124 = vld [vmem:[%s32 + $0xb8] sm:%s25]
        %125 = vst [vmem:[%s33 + $0xb4] sm:%s25] %v124
        %v126 = vld [vmem:[%s32 + $0xac] sm:%s25]
        %127 = vst [vmem:[%s33 + $0xb8] sm:%s25] %v126
        %v128 = vld [vmem:[%s32 + $0xbc] sm:%s25]
        %129 = vst [vmem:[%s33 + $0xbc] sm:%s25] %v128
        %v130 = vld [vmem:[%s32 + $0xc0] sm:%s25]
        %131 = vst [vmem:[%s33 + $0xc0] sm:%s25] %v130
        %v132 = vld [vmem:[%s32 + $0xd0] sm:%s25]
        %133 = vst [vmem:[%s33 + $0xc4] sm:%s25] %v132
        %v134 = vld [vmem:[%s32 + $0xc4] sm:%s25]
        %135 = vst [vmem:[%s33 + $0xc8] sm:%s25] %v134
        %v136 = vld [vmem:[%s32 + $0xd4] sm:%s25]
        %137 = vst [vmem:[%s33 + $0xcc] sm:%s25] %v136
        %v138 = vld [vmem:[%s32 + $0xc8] sm:%s25]
        %139 = vst [vmem:[%s33 + $0xd0] sm:%s25] %v138
        %v140 = vld [vmem:[%s32 + $0xd8] sm:%s25]
        %141 = vst [vmem:[%s33 + $0xd4] sm:%s25] %v140
        %v142 = vld [vmem:[%s32 + $0xcc] sm:%s25]
        %143 = vst [vmem:[%s33 + $0xd8] sm:%s25] %v142
        %v144 = vld [vmem:[%s32 + $0xdc] sm:%s25]
        %145 = vst [vmem:[%s33 + $0xdc] sm:%s25] %v144
        %v146 = vld [vmem:[%s32 + $0xe0] sm:%s25]
        %147 = vst [vmem:[%s33 + $0xe0] sm:%s25] %v146
        %v148 = vld [vmem:[%s32 + $0xf0] sm:%s25]
        %149 = vst [vmem:[%s33 + $0xe4] sm:%s25] %v148
        %v150 = vld [vmem:[%s32 + $0xe4] sm:%s25]
        %151 = vst [vmem:[%s33 + $0xe8] sm:%s25] %v150
        %v152 = vld [vmem:[%s32 + $0xf4] sm:%s25]
        %153 = vst [vmem:[%s33 + $0xec] sm:%s25] %v152
        %v154 = vld [vmem:[%s32 + $0xe8] sm:%s25]
        %155 = vst [vmem:[%s33 + $0xf0] sm:%s25] %v154
        %v156 = vld [vmem:[%s32 + $0xf8] sm:%s25]
        %157 = vst [vmem:[%s33 + $0xf4] sm:%s25] %v156
        %v158 = vld [vmem:[%s32 + $0xec] sm:%s25]
        %159 = vst [vmem:[%s33 + $0xf8] sm:%s25] %v158
        %v160 = vld [vmem:[%s32 + $0xfc] sm:%s25]
        %161 = vst [vmem:[%s33 + $0xfc] sm:%s25] %v160
      $region22: #{encoder_rnn_forward.1} parent=16 // loop_footer
        %s31 = sadd.s32 1, %s27
      $region23: #{encoder_rnn_forward.1} parent=16 // loop_footer_branch
        %26 = sbr.rel target = $region19
      $region24: #{encoder_rnn_forward.1} parent=16 // loop_exit
        _
    $region17: #{encoder_rnn_forward.1} parent=8 // pred_fallthru
      _
    // Predicated region
    $region43: #{encoder_rnn_forward.1} parent=8 // pred_check
      _
    $region44: #{encoder_rnn_forward.1} parent=8 // pred_check_branch
      %319 = sbr.rel (0) target = $region46
    $region45: #{encoder_rnn_forward.1} parent=8 // pred_region
      %320 = vsyncadd [#allocation3], 4096
    $region46: #{encoder_rnn_forward.1} parent=8 // pred_fallthru
      _
    %321 = vst [vmem:[#allocation4] sm:$0xff] 0.0
    %322 = vst [vmem:[#allocation5] sm:$0xff] 0.0
    %s323 = smul.u32 4, 16
    %s324 = smul.u32 %s323, 4
    %s325 = sshll.u32 %s324, 4
    %326 = dma.done [#allocation3], %s325
  $region9: #{encoder_rnn_forward.1} parent=0 // pred_fallthru
    _
  %v327 = vld [vmem:[#allocation4] sm:$0xff]
  %v328 = vld [vmem:[#allocation5] sm:$0xff]
  %v329 = vld [vmem:[#allocation2] sm:$0xff]
  %v330 = vld [vmem:[#allocation2 + $0x8] sm:$0xff]
  %v331 = vld [vmem:[#allocation2 + $0x10] sm:$0xff]
  %v332 = vld [vmem:[#allocation2 + $0x18] sm:$0xff]
  %v333 = vld [vmem:[#allocation2 + $0x20] sm:$0xff]
  %v334 = vld [vmem:[#allocation2 + $0x28] sm:$0xff]
  %v335 = vld [vmem:[#allocation2 + $0x30] sm:$0xff]
  %v336 = vld [vmem:[#allocation2 + $0x38] sm:$0xff]
  %v337 = vld [vmem:[#allocation2 + $0x40] sm:$0xff]
  %v338 = vld [vmem:[#allocation2 + $0x48] sm:$0xff]
  %v339 = vld [vmem:[#allocation2 + $0x50] sm:$0xff]
  %v340 = vld [vmem:[#allocation2 + $0x58] sm:$0xff]
  %v341 = vld [vmem:[#allocation2 + $0x60] sm:$0xff]
  %v342 = vld [vmem:[#allocation2 + $0x68] sm:$0xff]
  %v343 = vld [vmem:[#allocation2 + $0x70] sm:$0xff]
  %v344 = vld [vmem:[#allocation2 + $0x78] sm:$0xff]
  %v345 = vld [vmem:[#allocation2 + $0x80] sm:$0xff]
  %v346 = vld [vmem:[#allocation2 + $0x88] sm:$0xff]
  %v347 = vld [vmem:[#allocation2 + $0x90] sm:$0xff]
  %v348 = vld [vmem:[#allocation2 + $0x98] sm:$0xff]
  %v349 = vld [vmem:[#allocation2 + $0xa0] sm:$0xff]
  %v350 = vld [vmem:[#allocation2 + $0xa8] sm:$0xff]
  %v351 = vld [vmem:[#allocation2 + $0xb0] sm:$0xff]
  %v352 = vld [vmem:[#allocation2 + $0xb8] sm:$0xff]
  %v353 = vld [vmem:[#allocation2 + $0xc0] sm:$0xff]
  %v354 = vld [vmem:[#allocation2 + $0xc8] sm:$0xff]
  %v355 = vld [vmem:[#allocation2 + $0xd0] sm:$0xff]
  %v356 = vld [vmem:[#allocation2 + $0xd8] sm:$0xff]
  %v357 = vld [vmem:[#allocation2 + $0xe0] sm:$0xff]
  %v358 = vld [vmem:[#allocation2 + $0xe8] sm:$0xff]
  %v359 = vld [vmem:[#allocation2 + $0xf0] sm:$0xff]
  %v360 = vld [vmem:[#allocation2 + $0xf8] sm:$0xff]
  %v361 = vld [vmem:[%s0] sm:$0xff]
  %v362 = vld [vmem:[%s0 + $0x8] sm:$0xff]
  %v363 = vunpack.c.l.bf16 %v361
  %v364 = vunpack.c.h.bf16 %v361
  %v365 = vunpack.c.l.bf16 %v362
  %v366 = vunpack.c.h.bf16 %v362
  %v367 = vpack.c.bf16 %v327, %v327
  %368 = vmatprep.subr.bf16.mxu0 %v330
  %369 = vmatpush1.bf16.msra.mxu0 %v329
  %370 = vmatprep.subr.bf16.mxu0 %v334
  %371 = vmatpush1.bf16.msra.mxu0 %v333
  %372 = vmatprep.subr.bf16.mxu0 %v338
  %373 = vmatpush1.bf16.msra.mxu0 %v337
  %374 = vmatprep.subr.bf16.mxu0 %v342
  %375 = vmatpush1.bf16.msra.mxu0 %v341
  %376 = vmatprep.subr.bf16.mxu0 %v346
  %377 = vmatpush1.bf16.msra.mxu0 %v345
  %378 = vmatprep.subr.bf16.mxu0 %v350
  %379 = vmatpush1.bf16.msra.mxu0 %v349
  %380 = vmatprep.subr.bf16.mxu0 %v354
  %381 = vmatpush1.bf16.msra.mxu0 %v353
  %382 = vmatprep.subr.bf16.mxu0 %v358
  %383 = vmatpush1.bf16.msra.mxu0 %v357
  %384 = vmatprep.subr.bf16.mxu0 0
  %385 = vmatpush1.bf16.msra.mxu0 0
  %386 = vmatprep.subr.bf16.mxu0 0
  %387 = vmatpush1.bf16.msra.mxu0 0
  %388 = vmatprep.subr.bf16.mxu0 0
  %389 = vmatpush1.bf16.msra.mxu0 0
  %390 = vmatprep.subr.bf16.mxu0 0
  %391 = vmatpush1.bf16.msra.mxu0 0
  %392 = vmatprep.subr.bf16.mxu0 0
  %393 = vmatpush1.bf16.msra.mxu0 0
  %394 = vmatprep.subr.bf16.mxu0 0
  %395 = vmatpush1.bf16.msra.mxu0 0
  %396 = vmatprep.subr.bf16.mxu0 0
  %397 = vmatpush1.bf16.msra.mxu0 0
  %398 = vmatprep.subr.bf16.mxu0 0
  %399 = vmatpush1.bf16.msra.mxu0 0
  %400 = vmatprep.mubr.bf16.mxu0 0
  %401 = vmatmul.mubr.bf16.gmra.mrb[0].mxu0 %v367
  %v402 = vpop.f32.mrb[0].mxu0
  %v403 = vadd.f32 0.0, %v402
  %v404 = vpop.f32.mrb[0].mxu0
  %v405 = vadd.f32 0.0, %v404
  %v406 = vpop.f32.mrb[0].mxu0
  %v407 = vpop.f32.mrb[0].mxu0
  %408 = vdwg.mxu0
  %409 = vmatprep.subr.bf16.mxu0 %v332
  %410 = vmatpush1.bf16.msra.mxu0 %v331
  %411 = vmatprep.subr.bf16.mxu0 %v336
  %412 = vmatpush1.bf16.msra.mxu0 %v335
  %413 = vmatprep.subr.bf16.mxu0 %v340
  %414 = vmatpush1.bf16.msra.mxu0 %v339
  %415 = vmatprep.subr.bf16.mxu0 %v344
  %416 = vmatpush1.bf16.msra.mxu0 %v343
  %417 = vmatprep.subr.bf16.mxu0 %v348
  %418 = vmatpush1.bf16.msra.mxu0 %v347
  %419 = vmatprep.subr.bf16.mxu0 %v352
  %420 = vmatpush1.bf16.msra.mxu0 %v351
  %421 = vmatprep.subr.bf16.mxu0 %v356
  %422 = vmatpush1.bf16.msra.mxu0 %v355
  %423 = vmatprep.subr.bf16.mxu0 %v360
  %424 = vmatpush1.bf16.msra.mxu0 %v359
  %425 = vmatprep.subr.bf16.mxu0 0
  %426 = vmatpush1.bf16.msra.mxu0 0
  %427 = vmatprep.subr.bf16.mxu0 0
  %428 = vmatpush1.bf16.msra.mxu0 0
  %429 = vmatprep.subr.bf16.mxu0 0
  %430 = vmatpush1.bf16.msra.mxu0 0
  %431 = vmatprep.subr.bf16.mxu0 0
  %432 = vmatpush1.bf16.msra.mxu0 0
  %433 = vmatprep.subr.bf16.mxu0 0
  %434 = vmatpush1.bf16.msra.mxu0 0
  %435 = vmatprep.subr.bf16.mxu0 0
  %436 = vmatpush1.bf16.msra.mxu0 0
  %437 = vmatprep.subr.bf16.mxu0 0
  %438 = vmatpush1.bf16.msra.mxu0 0
  %439 = vmatprep.subr.bf16.mxu0 0
  %440 = vmatpush1.bf16.msra.mxu0 0
  %441 = vmatprep.mubr.bf16.mxu0 0
  %442 = vmatmul.mubr.bf16.gmra.mrb[0].mxu0 %v367
  %v443 = vpop.f32.mrb[0].mxu0
  %v444 = vadd.f32 0.0, %v443
  %v445 = vpop.f32.mrb[0].mxu0
  %v446 = vadd.f32 0.0, %v445
  %v447 = vpop.f32.mrb[0].mxu0
  %v448 = vpop.f32.mrb[0].mxu0
  %449 = vdwg.mxu0
  %v450 = vadd.f32 %v363, %v403
  %v451 = vadd.f32 %v364, %v405
  %v452 = vadd.f32 %v365, %v444
  %v453 = vadd.f32 %v366, %v446
  %v454 = vxor.u32 %v450, 2147483648
  %v455 = vmul.f32 %v454, 1.442695
  %v456 = vpow.pop %v455
  %v457 = vadd.f32 %v456, 1.0
  %v458 = vrcp.pop %v457
  %v459 = vmul.f32 1.0, %v458
  %v460 = vxor.u32 %v451, 2147483648
  %v461 = vmul.f32 %v460, 1.442695
  %v462 = vpow.pop %v461
  %v463 = vadd.f32 %v462, 1.0
  %v464 = vrcp.pop %v463
  %v465 = vmul.f32 1.0, %v464
  %v466 = vtanh.pop %v452
  %v467 = vxor.u32 %v453, 2147483648
  %v468 = vmul.f32 %v467, 1.442695
  %v469 = vpow.pop %v468
  %v470 = vadd.f32 %v469, 1.0
  %v471 = vrcp.pop %v470
  %v472 = vmul.f32 1.0, %v471
  %v473 = vmul.f32 %v465, %v328
  %v474 = vmul.f32 %v459, %v466
  %v475 = vadd.f32 %v473, %v474
  %v476 = vtanh.pop %v475
  %v477 = vmul.f32 %v472, %v476
  %478 = vst [vmem:[%s2] sm:$0xff] %v477
  %v479 = vld [vmem:[#allocation2] sm:$0xff]
  %v480 = vld [vmem:[#allocation2 + $0x8] sm:$0xff]
  %v481 = vld [vmem:[#allocation2 + $0x10] sm:$0xff]
  %v482 = vld [vmem:[#allocation2 + $0x18] sm:$0xff]
  %v483 = vld [vmem:[#allocation2 + $0x20] sm:$0xff]
  %v484 = vld [vmem:[#allocation2 + $0x28] sm:$0xff]
  %v485 = vld [vmem:[#allocation2 + $0x30] sm:$0xff]
  %v486 = vld [vmem:[#allocation2 + $0x38] sm:$0xff]
  %v487 = vld [vmem:[#allocation2 + $0x40] sm:$0xff]
  %v488 = vld [vmem:[#allocation2 + $0x48] sm:$0xff]
  %v489 = vld [vmem:[#allocation2 + $0x50] sm:$0xff]
  %v490 = vld [vmem:[#allocation2 + $0x58] sm:$0xff]
  %v491 = vld [vmem:[#allocation2 + $0x60] sm:$0xff]
  %v492 = vld [vmem:[#allocation2 + $0x68] sm:$0xff]
  %v493 = vld [vmem:[#allocation2 + $0x70] sm:$0xff]
  %v494 = vld [vmem:[#allocation2 + $0x78] sm:$0xff]
  %v495 = vld [vmem:[#allocation2 + $0x80] sm:$0xff]
  %v496 = vld [vmem:[#allocation2 + $0x88] sm:$0xff]
  %v497 = vld [vmem:[#allocation2 + $0x90] sm:$0xff]
  %v498 = vld [vmem:[#allocation2 + $0x98] sm:$0xff]
  %v499 = vld [vmem:[#allocation2 + $0xa0] sm:$0xff]
  %v500 = vld [vmem:[#allocation2 + $0xa8] sm:$0xff]
  %v501 = vld [vmem:[#allocation2 + $0xb0] sm:$0xff]
  %v502 = vld [vmem:[#allocation2 + $0xb8] sm:$0xff]
  %v503 = vld [vmem:[#allocation2 + $0xc0] sm:$0xff]
  %v504 = vld [vmem:[#allocation2 + $0xc8] sm:$0xff]
  %v505 = vld [vmem:[#allocation2 + $0xd0] sm:$0xff]
  %v506 = vld [vmem:[#allocation2 + $0xd8] sm:$0xff]
  %v507 = vld [vmem:[#allocation2 + $0xe0] sm:$0xff]
  %v508 = vld [vmem:[#allocation2 + $0xe8] sm:$0xff]
  %v509 = vld [vmem:[#allocation2 + $0xf0] sm:$0xff]
  %v510 = vld [vmem:[#allocation2 + $0xf8] sm:$0xff]
  %s511 = scalar_lea.vmem %s0, 16
  %v512 = vld [vmem:[%s511] sm:$0xff]
  %v513 = vld [vmem:[%s511 + $0x8] sm:$0xff]
  %v514 = vunpack.c.l.bf16 %v512
  %v515 = vunpack.c.h.bf16 %v512
  %v516 = vunpack.c.l.bf16 %v513
  %v517 = vunpack.c.h.bf16 %v513
  %v518 = vpack.c.bf16 %v477, %v477
  %519 = vmatprep.subr.bf16.mxu0 %v480
  %520 = vmatpush1.bf16.msra.mxu0 %v479
  %521 = vmatprep.subr.bf16.mxu0 %v484
  %522 = vmatpush1.bf16.msra.mxu0 %v483
  %523 = vmatprep.subr.bf16.mxu0 %v488
  %524 = vmatpush1.bf16.msra.mxu0 %v487
  %525 = vmatprep.subr.bf16.mxu0 %v492
  %526 = vmatpush1.bf16.msra.mxu0 %v491
  %527 = vmatprep.subr.bf16.mxu0 %v496
  %528 = vmatpush1.bf16.msra.mxu0 %v495
  %529 = vmatprep.subr.bf16.mxu0 %v500
  %530 = vmatpush1.bf16.msra.mxu0 %v499
  %531 = vmatprep.subr.bf16.mxu0 %v504
  %532 = vmatpush1.bf16.msra.mxu0 %v503
  %533 = vmatprep.subr.bf16.mxu0 %v508
  %534 = vmatpush1.bf16.msra.mxu0 %v507
  %535 = vmatprep.subr.bf16.mxu0 0
  %536 = vmatpush1.bf16.msra.mxu0 0
  %537 = vmatprep.subr.bf16.mxu0 0
  %538 = vmatpush1.bf16.msra.mxu0 0
  %539 = vmatprep.subr.bf16.mxu0 0
  %540 = vmatpush1.bf16.msra.mxu0 0
  %541 = vmatprep.subr.bf16.mxu0 0
  %542 = vmatpush1.bf16.msra.mxu0 0
  %543 = vmatprep.subr.bf16.mxu0 0
  %544 = vmatpush1.bf16.msra.mxu0 0
  %545 = vmatprep.subr.bf16.mxu0 0
  %546 = vmatpush1.bf16.msra.mxu0 0
  %547 = vmatprep.subr.bf16.mxu0 0
  %548 = vmatpush1.bf16.msra.mxu0 0
  %549 = vmatprep.subr.bf16.mxu0 0
  %550 = vmatpush1.bf16.msra.mxu0 0
  %551 = vmatprep.mubr.bf16.mxu0 0
  %552 = vmatmul.mubr.bf16.gmra.mrb[0].mxu0 %v518
  %v553 = vpop.f32.mrb[0].mxu0
  %v554 = vadd.f32 0.0, %v553
  %v555 = vpop.f32.mrb[0].mxu0
  %v556 = vadd.f32 0.0, %v555
  %v557 = vpop.f32.mrb[0].mxu0
  %v558 = vpop.f32.mrb[0].mxu0
  %559 = vdwg.mxu0
  %560 = vmatprep.subr.bf16.mxu0 %v482
  %561 = vmatpush1.bf16.msra.mxu0 %v481
  %562 = vmatprep.subr.bf16.mxu0 %v486
  %563 = vmatpush1.bf16.msra.mxu0 %v485
  %564 = vmatprep.subr.bf16.mxu0 %v490
  %565 = vmatpush1.bf16.msra.mxu0 %v489
  %566 = vmatprep.subr.bf16.mxu0 %v494
  %567 = vmatpush1.bf16.msra.mxu0 %v493
  %568 = vmatprep.subr.bf16.mxu0 %v498
  %569 = vmatpush1.bf16.msra.mxu0 %v497
  %570 = vmatprep.subr.bf16.mxu0 %v502
  %571 = vmatpush1.bf16.msra.mxu0 %v501
  %572 = vmatprep.subr.bf16.mxu0 %v506
  %573 = vmatpush1.bf16.msra.mxu0 %v505
  %574 = vmatprep.subr.bf16.mxu0 %v510
  %575 = vmatpush1.bf16.msra.mxu0 %v509
  %576 = vmatprep.subr.bf16.mxu0 0
  %577 = vmatpush1.bf16.msra.mxu0 0
  %578 = vmatprep.subr.bf16.mxu0 0
  %579 = vmatpush1.bf16.msra.mxu0 0
  %580 = vmatprep.subr.bf16.mxu0 0
  %581 = vmatpush1.bf16.msra.mxu0 0
  %582 = vmatprep.subr.bf16.mxu0 0
  %583 = vmatpush1.bf16.msra.mxu0 0
  %584 = vmatprep.subr.bf16.mxu0 0
  %585 = vmatpush1.bf16.msra.mxu0 0
  %586 = vmatprep.subr.bf16.mxu0 0
  %587 = vmatpush1.bf16.msra.mxu0 0
  %588 = vmatprep.subr.bf16.mxu0 0
  %589 = vmatpush1.bf16.msra.mxu0 0
  %590 = vmatprep.subr.bf16.mxu0 0
  %591 = vmatpush1.bf16.msra.mxu0 0
  %592 = vmatprep.mubr.bf16.mxu0 0
  %593 = vmatmul.mubr.bf16.gmra.mrb[0].mxu0 %v518
  %v594 = vpop.f32.mrb[0].mxu0
  %v595 = vadd.f32 0.0, %v594
  %v596 = vpop.f32.mrb[0].mxu0
  %v597 = vadd.f32 0.0, %v596
  %v598 = vpop.f32.mrb[0].mxu0
  %v599 = vpop.f32.mrb[0].mxu0
  %600 = vdwg.mxu0
  %v601 = vadd.f32 %v514, %v554
  %v602 = vadd.f32 %v515, %v556
  %v603 = vadd.f32 %v516, %v595
  %v604 = vadd.f32 %v517, %v597
  %v605 = vxor.u32 %v601, 2147483648
  %v606 = vmul.f32 %v605, 1.442695
  %v607 = vpow.pop %v606
  %v608 = vadd.f32 %v607, 1.0
  %v609 = vrcp.pop %v608
  %v610 = vmul.f32 1.0, %v609
  %v611 = vxor.u32 %v602, 2147483648
  %v612 = vmul.f32 %v611, 1.442695
  %v613 = vpow.pop %v612
  %v614 = vadd.f32 %v613, 1.0
  %v615 = vrcp.pop %v614
  %v616 = vmul.f32 1.0, %v615
  %v617 = vtanh.pop %v603
  %v618 = vxor.u32 %v604, 2147483648
  %v619 = vmul.f32 %v618, 1.442695
  %v620 = vpow.pop %v619
  %v621 = vadd.f32 %v620, 1.0
  %v622 = vrcp.pop %v621
  %v623 = vmul.f32 1.0, %v622
  %v624 = vmul.f32 %v616, %v475
  %v625 = vmul.f32 %v610, %v617
  %v626 = vadd.f32 %v624, %v625
  %v627 = vtanh.pop %v626
  %v628 = vmul.f32 %v623, %v627
  %s629 = scalar_lea.vmem %s2, 8
  %630 = vst [vmem:[%s629] sm:$0xff] %v628
  %v631 = vld [vmem:[#allocation2] sm:$0xff]
  %v632 = vld [vmem:[#allocation2 + $0x8] sm:$0xff]
  %v633 = vld [vmem:[#allocation2 + $0x10] sm:$0xff]
  %v634 = vld [vmem:[#allocation2 + $0x18] sm:$0xff]
  %v635 = vld [vmem:[#allocation2 + $0x20] sm:$0xff]
  %v636 = vld [vmem:[#allocation2 + $0x28] sm:$0xff]
  %v637 = vld [vmem:[#allocation2 + $0x30] sm:$0xff]
  %v638 = vld [vmem:[#allocation2 + $0x38] sm:$0xff]
  %v639 = vld [vmem:[#allocation2 + $0x40] sm:$0xff]
  %v640 = vld [vmem:[#allocation2 + $0x48] sm:$0xff]
  %v641 = vld [vmem:[#allocation2 + $0x50] sm:$0xff]
  %v642 = vld [vmem:[#allocation2 + $0x58] sm:$0xff]
  %v643 = vld [vmem:[#allocation2 + $0x60] sm:$0xff]
  %v644 = vld [vmem:[#allocation2 + $0x68] sm:$0xff]
  %v645 = vld [vmem:[#allocation2 + $0x70] sm:$0xff]
  %v646 = vld [vmem:[#allocation2 + $0x78] sm:$0xff]
  %v647 = vld [vmem:[#allocation2 + $0x80] sm:$0xff]
  %v648 = vld [vmem:[#allocation2 + $0x88] sm:$0xff]
  %v649 = vld [vmem:[#allocation2 + $0x90] sm:$0xff]
  %v650 = vld [vmem:[#allocation2 + $0x98] sm:$0xff]
  %v651 = vld [vmem:[#allocation2 + $0xa0] sm:$0xff]
  %v652 = vld [vmem:[#allocation2 + $0xa8] sm:$0xff]
  %v653 = vld [vmem:[#allocation2 + $0xb0] sm:$0xff]
  %v654 = vld [vmem:[#allocation2 + $0xb8] sm:$0xff]
  %v655 = vld [vmem:[#allocation2 + $0xc0] sm:$0xff]
  %v656 = vld [vmem:[#allocation2 + $0xc8] sm:$0xff]
  %v657 = vld [vmem:[#allocation2 + $0xd0] sm:$0xff]
  %v658 = vld [vmem:[#allocation2 + $0xd8] sm:$0xff]
  %v659 = vld [vmem:[#allocation2 + $0xe0] sm:$0xff]
  %v660 = vld [vmem:[#allocation2 + $0xe8] sm:$0xff]
  %v661 = vld [vmem:[#allocation2 + $0xf0] sm:$0xff]
  %v662 = vld [vmem:[#allocation2 + $0xf8] sm:$0xff]
  %s663 = scalar_lea.vmem %s0, 32
  %v664 = vld [vmem:[%s663] sm:$0xff]
  %v665 = vld [vmem:[%s663 + $0x8] sm:$0xff]
  %v666 = vunpack.c.l.bf16 %v664
  %v667 = vunpack.c.h.bf16 %v664
  %v668 = vunpack.c.l.bf16 %v665
  %v669 = vunpack.c.h.bf16 %v665
  %v670 = vpack.c.bf16 %v628, %v628
  %671 = vmatprep.subr.bf16.mxu0 %v632
  %672 = vmatpush1.bf16.msra.mxu0 %v631
  %673 = vmatprep.subr.bf16.mxu0 %v636
  %674 = vmatpush1.bf16.msra.mxu0 %v635
  %675 = vmatprep.subr.bf16.mxu0 %v640
  %676 = vmatpush1.bf16.msra.mxu0 %v639
  %677 = vmatprep.subr.bf16.mxu0 %v644
  %678 = vmatpush1.bf16.msra.mxu0 %v643
  %679 = vmatprep.subr.bf16.mxu0 %v648
  %680 = vmatpush1.bf16.msra.mxu0 %v647
  %681 = vmatprep.subr.bf16.mxu0 %v652
  %682 = vmatpush1.bf16.msra.mxu0 %v651
  %683 = vmatprep.subr.bf16.mxu0 %v656
  %684 = vmatpush1.bf16.msra.mxu0 %v655
  %685 = vmatprep.subr.bf16.mxu0 %v660
  %686 = vmatpush1.bf16.msra.mxu0 %v659
  %687 = vmatprep.subr.bf16.mxu0 0
  %688 = vmatpush1.bf16.msra.mxu0 0
  %689 = vmatprep.subr.bf16.mxu0 0
  %690 = vmatpush1.bf16.msra.mxu0 0
  %691 = vmatprep.subr.bf16.mxu0 0
  %692 = vmatpush1.bf16.msra.mxu0 0
  %693 = vmatprep.subr.bf16.mxu0 0
  %694 = vmatpush1.bf16.msra.mxu0 0
  %695 = vmatprep.subr.bf16.mxu0 0
  %696 = vmatpush1.bf16.msra.mxu0 0
  %697 = vmatprep.subr.bf16.mxu0 0
  %698 = vmatpush1.bf16.msra.mxu0 0
  %699 = vmatprep.subr.bf16.mxu0 0
  %700 = vmatpush1.bf16.msra.mxu0 0
  %701 = vmatprep.subr.bf16.mxu0 0
  %702 = vmatpush1.bf16.msra.mxu0 0
  %703 = vmatprep.mubr.bf16.mxu0 0
  %704 = vmatmul.mubr.bf16.gmra.mrb[0].mxu0 %v670
  %v705 = vpop.f32.mrb[0].mxu0
  %v706 = vadd.f32 0.0, %v705
  %v707 = vpop.f32.mrb[0].mxu0
  %v708 = vadd.f32 0.0, %v707
  %v709 = vpop.f32.mrb[0].mxu0
  %v710 = vpop.f32.mrb[0].mxu0
  %711 = vdwg.mxu0
  %712 = vmatprep.subr.bf16.mxu0 %v634
  %713 = vmatpush1.bf16.msra.mxu0 %v633
  %714 = vmatprep.subr.bf16.mxu0 %v638
  %715 = vmatpush1.bf16.msra.mxu0 %v637
  %716 = vmatprep.subr.bf16.mxu0 %v642
  %717 = vmatpush1.bf16.msra.mxu0 %v641
  %718 = vmatprep.subr.bf16.mxu0 %v646
  %719 = vmatpush1.bf16.msra.mxu0 %v645
  %720 = vmatprep.subr.bf16.mxu0 %v650
  %721 = vmatpush1.bf16.msra.mxu0 %v649
  %722 = vmatprep.subr.bf16.mxu0 %v654
  %723 = vmatpush1.bf16.msra.mxu0 %v653
  %724 = vmatprep.subr.bf16.mxu0 %v658
  %725 = vmatpush1.bf16.msra.mxu0 %v657
  %726 = vmatprep.subr.bf16.mxu0 %v662
  %727 = vmatpush1.bf16.msra.mxu0 %v661
  %728 = vmatprep.subr.bf16.mxu0 0
  %729 = vmatpush1.bf16.msra.mxu0 0
  %730 = vmatprep.subr.bf16.mxu0 0
  %731 = vmatpush1.bf16.msra.mxu0 0
  %732 = vmatprep.subr.bf16.mxu0 0
  %733 = vmatpush1.bf16.msra.mxu0 0
  %734 = vmatprep.subr.bf16.mxu0 0
  %735 = vmatpush1.bf16.msra.mxu0 0
  %736 = vmatprep.subr.bf16.mxu0 0
  %737 = vmatpush1.bf16.msra.mxu0 0
  %738 = vmatprep.subr.bf16.mxu0 0
  %739 = vmatpush1.bf16.msra.mxu0 0
  %740 = vmatprep.subr.bf16.mxu0 0
  %741 = vmatpush1.bf16.msra.mxu0 0
  %742 = vmatprep.subr.bf16.mxu0 0
  %743 = vmatpush1.bf16.msra.mxu0 0
  %744 = vmatprep.mubr.bf16.mxu0 0
  %745 = vmatmul.mubr.bf16.gmra.mrb[0].mxu0 %v670
  %v746 = vpop.f32.mrb[0].mxu0
  %v747 = vadd.f32 0.0, %v746
  %v748 = vpop.f32.mrb[0].mxu0
  %v749 = vadd.f32 0.0, %v748
  %v750 = vpop.f32.mrb[0].mxu0
  %v751 = vpop.f32.mrb[0].mxu0
  %752 = vdwg.mxu0
  %v753 = vadd.f32 %v666, %v706
  %v754 = vadd.f32 %v667, %v708
  %v755 = vadd.f32 %v668, %v747
  %v756 = vadd.f32 %v669, %v749
  %v757 = vxor.u32 %v753, 2147483648
  %v758 = vmul.f32 %v757, 1.442695
  %v759 = vpow.pop %v758
  %v760 = vadd.f32 %v759, 1.0
  %v761 = vrcp.pop %v760
  %v762 = vmul.f32 1.0, %v761
  %v763 = vxor.u32 %v754, 2147483648
  %v764 = vmul.f32 %v763, 1.442695
  %v765 = vpow.pop %v764
  %v766 = vadd.f32 %v765, 1.0
  %v767 = vrcp.pop %v766
  %v768 = vmul.f32 1.0, %v767
  %v769 = vtanh.pop %v755
  %v770 = vxor.u32 %v756, 2147483648
  %v771 = vmul.f32 %v770, 1.442695
  %v772 = vpow.pop %v771
  %v773 = vadd.f32 %v772, 1.0
  %v774 = vrcp.pop %v773
  %v775 = vmul.f32 1.0, %v774
  %v776 = vmul.f32 %v768, %v626
  %v777 = vmul.f32 %v762, %v769
  %v778 = vadd.f32 %v776, %v777
  %v779 = vtanh.pop %v778
  %v780 = vmul.f32 %v775, %v779
  %s781 = scalar_lea.vmem %s2, 16
  %782 = vst [vmem:[%s781] sm:$0xff] %v780
  %v783 = vld [vmem:[#allocation2] sm:$0xff]
  %v784 = vld [vmem:[#allocation2 + $0x8] sm:$0xff]
  %v785 = vld [vmem:[#allocation2 + $0x10] sm:$0xff]
  %v786 = vld [vmem:[#allocation2 + $0x18] sm:$0xff]
  %v787 = vld [vmem:[#allocation2 + $0x20] sm:$0xff]
  %v788 = vld [vmem:[#allocation2 + $0x28] sm:$0xff]
  %v789 = vld [vmem:[#allocation2 + $0x30] sm:$0xff]
  %v790 = vld [vmem:[#allocation2 + $0x38] sm:$0xff]
  %v791 = vld [vmem:[#allocation2 + $0x40] sm:$0xff]
  %v792 = vld [vmem:[#allocation2 + $0x48] sm:$0xff]
  %v793 = vld [vmem:[#allocation2 + $0x50] sm:$0xff]
  %v794 = vld [vmem:[#allocation2 + $0x58] sm:$0xff]
  %v795 = vld [vmem:[#allocation2 + $0x60] sm:$0xff]
  %v796 = vld [vmem:[#allocation2 + $0x68] sm:$0xff]
  %v797 = vld [vmem:[#allocation2 + $0x70] sm:$0xff]
  %v798 = vld [vmem:[#allocation2 + $0x78] sm:$0xff]
  %v799 = vld [vmem:[#allocation2 + $0x80] sm:$0xff]
  %v800 = vld [vmem:[#allocation2 + $0x88] sm:$0xff]
  %v801 = vld [vmem:[#allocation2 + $0x90] sm:$0xff]
  %v802 = vld [vmem:[#allocation2 + $0x98] sm:$0xff]
  %v803 = vld [vmem:[#allocation2 + $0xa0] sm:$0xff]
  %v804 = vld [vmem:[#allocation2 + $0xa8] sm:$0xff]
  %v805 = vld [vmem:[#allocation2 + $0xb0] sm:$0xff]
  %v806 = vld [vmem:[#allocation2 + $0xb8] sm:$0xff]
  %v807 = vld [vmem:[#allocation2 + $0xc0] sm:$0xff]
  %v808 = vld [vmem:[#allocation2 + $0xc8] sm:$0xff]
  %v809 = vld [vmem:[#allocation2 + $0xd0] sm:$0xff]
  %v810 = vld [vmem:[#allocation2 + $0xd8] sm:$0xff]
  %v811 = vld [vmem:[#allocation2 + $0xe0] sm:$0xff]
  %v812 = vld [vmem:[#allocation2 + $0xe8] sm:$0xff]
  %v813 = vld [vmem:[#allocation2 + $0xf0] sm:$0xff]
  %v814 = vld [vmem:[#allocation2 + $0xf8] sm:$0xff]
  %s815 = scalar_lea.vmem %s0, 48
  %v816 = vld [vmem:[%s815] sm:$0xff]
  %v817 = vld [vmem:[%s815 + $0x8] sm:$0xff]
  %v818 = vunpack.c.l.bf16 %v816
  %v819 = vunpack.c.h.bf16 %v816
  %v820 = vunpack.c.l.bf16 %v817
  %v821 = vunpack.c.h.bf16 %v817
  %v822 = vpack.c.bf16 %v780, %v780
  %823 = vmatprep.subr.bf16.mxu0 %v784
  %824 = vmatpush1.bf16.msra.mxu0 %v783
  %825 = vmatprep.subr.bf16.mxu0 %v788
  %826 = vmatpush1.bf16.msra.mxu0 %v787
  %827 = vmatprep.subr.bf16.mxu0 %v792
  %828 = vmatpush1.bf16.msra.mxu0 %v791
  %829 = vmatprep.subr.bf16.mxu0 %v796
  %830 = vmatpush1.bf16.msra.mxu0 %v795
  %831 = vmatprep.subr.bf16.mxu0 %v800
  %832 = vmatpush1.bf16.msra.mxu0 %v799
  %833 = vmatprep.subr.bf16.mxu0 %v804
  %834 = vmatpush1.bf16.msra.mxu0 %v803
  %835 = vmatprep.subr.bf16.mxu0 %v808
  %836 = vmatpush1.bf16.msra.mxu0 %v807
  %837 = vmatprep.subr.bf16.mxu0 %v812
  %838 = vmatpush1.bf16.msra.mxu0 %v811
  %839 = vmatprep.subr.bf16.mxu0 0
  %840 = vmatpush1.bf16.msra.mxu0 0
  %841 = vmatprep.subr.bf16.mxu0 0
  %842 = vmatpush1.bf16.msra.mxu0 0
  %843 = vmatprep.subr.bf16.mxu0 0
  %844 = vmatpush1.bf16.msra.mxu0 0
  %845 = vmatprep.subr.bf16.mxu0 0
  %846 = vmatpush1.bf16.msra.mxu0 0
  %847 = vmatprep.subr.bf16.mxu0 0
  %848 = vmatpush1.bf16.msra.mxu0 0
  %849 = vmatprep.subr.bf16.mxu0 0
  %850 = vmatpush1.bf16.msra.mxu0 0
  %851 = vmatprep.subr.bf16.mxu0 0
  %852 = vmatpush1.bf16.msra.mxu0 0
  %853 = vmatprep.subr.bf16.mxu0 0
  %854 = vmatpush1.bf16.msra.mxu0 0
  %855 = vmatprep.mubr.bf16.mxu0 0
  %856 = vmatmul.mubr.bf16.gmra.mrb[0].mxu0 %v822
  %v857 = vpop.f32.mrb[0].mxu0
  %v858 = vadd.f32 0.0, %v857
  %v859 = vpop.f32.mrb[0].mxu0
  %v860 = vadd.f32 0.0, %v859
  %v861 = vpop.f32.mrb[0].mxu0
  %v862 = vpop.f32.mrb[0].mxu0
  %863 = vdwg.mxu0
  %864 = vmatprep.subr.bf16.mxu0 %v786
  %865 = vmatpush1.bf16.msra.mxu0 %v785
  %866 = vmatprep.subr.bf16.mxu0 %v790
  %867 = vmatpush1.bf16.msra.mxu0 %v789
  %868 = vmatprep.subr.bf16.mxu0 %v794
  %869 = vmatpush1.bf16.msra.mxu0 %v793
  %870 = vmatprep.subr.bf16.mxu0 %v798
  %871 = vmatpush1.bf16.msra.mxu0 %v797
  %872 = vmatprep.subr.bf16.mxu0 %v802
  %873 = vmatpush1.bf16.msra.mxu0 %v801
  %874 = vmatprep.subr.bf16.mxu0 %v806
  %875 = vmatpush1.bf16.msra.mxu0 %v805
  %876 = vmatprep.subr.bf16.mxu0 %v810
  %877 = vmatpush1.bf16.msra.mxu0 %v809
  %878 = vmatprep.subr.bf16.mxu0 %v814
  %879 = vmatpush1.bf16.msra.mxu0 %v813
  %880 = vmatprep.subr.bf16.mxu0 0
  %881 = vmatpush1.bf16.msra.mxu0 0
  %882 = vmatprep.subr.bf16.mxu0 0
  %883 = vmatpush1.bf16.msra.mxu0 0
  %884 = vmatprep.subr.bf16.mxu0 0
  %885 = vmatpush1.bf16.msra.mxu0 0
  %886 = vmatprep.subr.bf16.mxu0 0
  %887 = vmatpush1.bf16.msra.mxu0 0
  %888 = vmatprep.subr.bf16.mxu0 0
  %889 = vmatpush1.bf16.msra.mxu0 0
  %890 = vmatprep.subr.bf16.mxu0 0
  %891 = vmatpush1.bf16.msra.mxu0 0
  %892 = vmatprep.subr.bf16.mxu0 0
  %893 = vmatpush1.bf16.msra.mxu0 0
  %894 = vmatprep.subr.bf16.mxu0 0
  %895 = vmatpush1.bf16.msra.mxu0 0
  %896 = vmatprep.mubr.bf16.mxu0 0
  %897 = vmatmul.mubr.bf16.gmra.mrb[0].mxu0 %v822
  %v898 = vpop.f32.mrb[0].mxu0
  %v899 = vadd.f32 0.0, %v898
  %v900 = vpop.f32.mrb[0].mxu0
  %v901 = vadd.f32 0.0, %v900
  %v902 = vpop.f32.mrb[0].mxu0
  %v903 = vpop.f32.mrb[0].mxu0
  %904 = vdwg.mxu0
  %v905 = vadd.f32 %v818, %v858
  %v906 = vadd.f32 %v819, %v860
  %v907 = vadd.f32 %v820, %v899
  %v908 = vadd.f32 %v821, %v901
  %v909 = vxor.u32 %v905, 2147483648
  %v910 = vmul.f32 %v909, 1.442695
  %v911 = vpow.pop %v910
  %v912 = vadd.f32 %v911, 1.0
  %v913 = vrcp.pop %v912
  %v914 = vmul.f32 1.0, %v913
  %v915 = vxor.u32 %v906, 2147483648
  %v916 = vmul.f32 %v915, 1.442695
  %v917 = vpow.pop %v916
  %v918 = vadd.f32 %v917, 1.0
  %v919 = vrcp.pop %v918
  %v920 = vmul.f32 1.0, %v919
  %v921 = vtanh.pop %v907
  %v922 = vxor.u32 %v908, 2147483648
  %v923 = vmul.f32 %v922, 1.442695
  %v924 = vpow.pop %v923
  %v925 = vadd.f32 %v924, 1.0
  %v926 = vrcp.pop %v925
  %v927 = vmul.f32 1.0, %v926
  %v928 = vmul.f32 %v920, %v778
  %v929 = vmul.f32 %v914, %v921
  %v930 = vadd.f32 %v928, %v929
  %v931 = vtanh.pop %v930
  %v932 = vmul.f32 %v927, %v931
  %s933 = scalar_lea.vmem %s2, 24
  %934 = vst [vmem:[%s933] sm:$0xff] %v932
  %v935 = vld [vmem:[#allocation2] sm:$0xff]
  %v936 = vld [vmem:[#allocation2 + $0x8] sm:$0xff]
  %v937 = vld [vmem:[#allocation2 + $0x10] sm:$0xff]
  %v938 = vld [vmem:[#allocation2 + $0x18] sm:$0xff]
  %v939 = vld [vmem:[#allocation2 + $0x20] sm:$0xff]
  %v940 = vld [vmem:[#allocation2 + $0x28] sm:$0xff]
  %v941 = vld [vmem:[#allocation2 + $0x30] sm:$0xff]
  %v942 = vld [vmem:[#allocation2 + $0x38] sm:$0xff]
  %v943 = vld [vmem:[#allocation2 + $0x40] sm:$0xff]
  %v944 = vld [vmem:[#allocation2 + $0x48] sm:$0xff]
  %v945 = vld [vmem:[#allocation2 + $0x50] sm:$0xff]
  %v946 = vld [vmem:[#allocation2 + $0x58] sm:$0xff]
  %v947 = vld [vmem:[#allocation2 + $0x60] sm:$0xff]
  %v948 = vld [vmem:[#allocation2 + $0x68] sm:$0xff]
  %v949 = vld [vmem:[#allocation2 + $0x70] sm:$0xff]
  %v950 = vld [vmem:[#allocation2 + $0x78] sm:$0xff]
  %v951 = vld [vmem:[#allocation2 + $0x80] sm:$0xff]
  %v952 = vld [vmem:[#allocation2 + $0x88] sm:$0xff]
  %v953 = vld [vmem:[#allocation2 + $0x90] sm:$0xff]
  %v954 = vld [vmem:[#allocation2 + $0x98] sm:$0xff]
  %v955 = vld [vmem:[#allocation2 + $0xa0] sm:$0xff]
  %v956 = vld [vmem:[#allocation2 + $0xa8] sm:$0xff]
  %v957 = vld [vmem:[#allocation2 + $0xb0] sm:$0xff]
  %v958 = vld [vmem:[#allocation2 + $0xb8] sm:$0xff]
  %v959 = vld [vmem:[#allocation2 + $0xc0] sm:$0xff]
  %v960 = vld [vmem:[#allocation2 + $0xc8] sm:$0xff]
  %v961 = vld [vmem:[#allocation2 + $0xd0] sm:$0xff]
  %v962 = vld [vmem:[#allocation2 + $0xd8] sm:$0xff]
  %v963 = vld [vmem:[#allocation2 + $0xe0] sm:$0xff]
  %v964 = vld [vmem:[#allocation2 + $0xe8] sm:$0xff]
  %v965 = vld [vmem:[#allocation2 + $0xf0] sm:$0xff]
  %v966 = vld [vmem:[#allocation2 + $0xf8] sm:$0xff]
  %s967 = scalar_lea.vmem %s0, 64
  %v968 = vld [vmem:[%s967] sm:$0xff]
  %v969 = vld [vmem:[%s967 + $0x8] sm:$0xff]
  %v970 = vunpack.c.l.bf16 %v968
  %v971 = vunpack.c.h.bf16 %v968
  %v972 = vunpack.c.l.bf16 %v969
  %v973 = vunpack.c.h.bf16 %v969
  %v974 = vpack.c.bf16 %v932, %v932
  %975 = vmatprep.subr.bf16.mxu0 %v936
  %976 = vmatpush1.bf16.msra.mxu0 %v935
  %977 = vmatprep.subr.bf16.mxu0 %v940
  %978 = vmatpush1.bf16.msra.mxu0 %v939
  %979 = vmatprep.subr.bf16.mxu0 %v944
  %980 = vmatpush1.bf16.msra.mxu0 %v943
  %981 = vmatprep.subr.bf16.mxu0 %v948
  %982 = vmatpush1.bf16.msra.mxu0 %v947
  %983 = vmatprep.subr.bf16.mxu0 %v952
  %984 = vmatpush1.bf16.msra.mxu0 %v951
  %985 = vmatprep.subr.bf16.mxu0 %v956
  %986 = vmatpush1.bf16.msra.mxu0 %v955
  %987 = vmatprep.subr.bf16.mxu0 %v960
  %988 = vmatpush1.bf16.msra.mxu0 %v959
  %989 = vmatprep.subr.bf16.mxu0 %v964
  %990 = vmatpush1.bf16.msra.mxu0 %v963
  %991 = vmatprep.subr.bf16.mxu0 0
  %992 = vmatpush1.bf16.msra.mxu0 0
  %993 = vmatprep.subr.bf16.mxu0 0
  %994 = vmatpush1.bf16.msra.mxu0 0
  %995 = vmatprep.subr.bf16.mxu0 0
  %996 = vmatpush1.bf16.msra.mxu0 0
  %997 = vmatprep.subr.bf16.mxu0 0
  %998 = vmatpush1.bf16.msra.mxu0 0
  %999 = vmatprep.subr.bf16.mxu0 0
  %1000 = vmatpush1.bf16.msra.mxu0 0
  %1001 = vmatprep.subr.bf16.mxu0 0
  %1002 = vmatpush1.bf16.msra.mxu0 0
  %1003 = vmatprep.subr.bf16.mxu0 0
  %1004 = vmatpush1.bf16.msra.mxu0 0
  %1005 = vmatprep.subr.bf16.mxu0 0
  %1006 = vmatpush1.bf16.msra.mxu0 0
  %1007 = vmatprep.mubr.bf16.mxu0 0
  %1008 = vmatmul.mubr.bf16.gmra.mrb[0].mxu0 %v974
  %v1009 = vpop.f32.mrb[0].mxu0
  %v1010 = vadd.f32 0.0, %v1009
  %v1011 = vpop.f32.mrb[0].mxu0
  %v1012 = vadd.f32 0.0, %v1011
  %v1013 = vpop.f32.mrb[0].mxu0
  %v1014 = vpop.f32.mrb[0].mxu0
  %1015 = vdwg.mxu0
  %1016 = vmatprep.subr.bf16.mxu0 %v938
  %1017 = vmatpush1.bf16.msra.mxu0 %v937
  %1018 = vmatprep.subr.bf16.mxu0 %v942
  %1019 = vmatpush1.bf16.msra.mxu0 %v941
  %1020 = vmatprep.subr.bf16.mxu0 %v946
  %1021 = vmatpush1.bf16.msra.mxu0 %v945
  %1022 = vmatprep.subr.bf16.mxu0 %v950
  %1023 = vmatpush1.bf16.msra.mxu0 %v949
  %1024 = vmatprep.subr.bf16.mxu0 %v954
  %1025 = vmatpush1.bf16.msra.mxu0 %v953
  %1026 = vmatprep.subr.bf16.mxu0 %v958
  %1027 = vmatpush1.bf16.msra.mxu0 %v957
  %1028 = vmatprep.subr.bf16.mxu0 %v962
  %1029 = vmatpush1.bf16.msra.mxu0 %v961
  %1030 = vmatprep.subr.bf16.mxu0 %v966
  %1031 = vmatpush1.bf16.msra.mxu0 %v965
  %1032 = vmatprep.subr.bf16.mxu0 0
  %1033 = vmatpush1.bf16.msra.mxu0 0
  %1034 = vmatprep.subr.bf16.mxu0 0
  %1035 = vmatpush1.bf16.msra.mxu0 0
  %1036 = vmatprep.subr.bf16.mxu0 0
  %1037 = vmatpush1.bf16.msra.mxu0 0
  %1038 = vmatprep.subr.bf16.mxu0 0
  %1039 = vmatpush1.bf16.msra.mxu0 0
  %1040 = vmatprep.subr.bf16.mxu0 0
  %1041 = vmatpush1.bf16.msra.mxu0 0
  %1042 = vmatprep.subr.bf16.mxu0 0
  %1043 = vmatpush1.bf16.msra.mxu0 0
  %1044 = vmatprep.subr.bf16.mxu0 0
  %1045 = vmatpush1.bf16.msra.mxu0 0
  %1046 = vmatprep.subr.bf16.mxu0 0
  %1047 = vmatpush1.bf16.msra.mxu0 0
  %1048 = vmatprep.mubr.bf16.mxu0 0
  %1049 = vmatmul.mubr.bf16.gmra.mrb[0].mxu0 %v974
  %v1050 = vpop.f32.mrb[0].mxu0
  %v1051 = vadd.f32 0.0, %v1050
  %v1052 = vpop.f32.mrb[0].mxu0
  %v1053 = vadd.f32 0.0, %v1052
  %v1054 = vpop.f32.mrb[0].mxu0
  %v1055 = vpop.f32.mrb[0].mxu0
  %1056 = vdwg.mxu0
  %v1057 = vadd.f32 %v970, %v1010
  %v1058 = vadd.f32 %v971, %v1012
  %v1059 = vadd.f32 %v972, %v1051
  %v1060 = vadd.f32 %v973, %v1053
  %v1061 = vxor.u32 %v1057, 2147483648
  %v1062 = vmul.f32 %v1061, 1.442695
  %v1063 = vpow.pop %v1062
  %v1064 = vadd.f32 %v1063, 1.0
  %v1065 = vrcp.pop %v1064
  %v1066 = vmul.f32 1.0, %v1065
  %v1067 = vxor.u32 %v1058, 2147483648
  %v1068 = vmul.f32 %v1067, 1.442695
  %v1069 = vpow.pop %v1068
  %v1070 = vadd.f32 %v1069, 1.0
  %v1071 = vrcp.pop %v1070
  %v1072 = vmul.f32 1.0, %v1071
  %v1073 = vtanh.pop %v1059
  %v1074 = vxor.u32 %v1060, 2147483648
  %v1075 = vmul.f32 %v1074, 1.442695
  %v1076 = vpow.pop %v1075
  %v1077 = vadd.f32 %v1076, 1.0
  %v1078 = vrcp.pop %v1077
  %v1079 = vmul.f32 1.0, %v1078
  %v1080 = vmul.f32 %v1072, %v930
  %v1081 = vmul.f32 %v1066, %v1073
  %v1082 = vadd.f32 %v1080, %v1081
  %v1083 = vtanh.pop %v1082
  %v1084 = vmul.f32 %v1079, %v1083
  %s1085 = scalar_lea.vmem %s2, 32
  %1086 = vst [vmem:[%s1085] sm:$0xff] %v1084
  %v1087 = vld [vmem:[#allocation2] sm:$0xff]
  %v1088 = vld [vmem:[#allocation2 + $0x8] sm:$0xff]
  %v1089 = vld [vmem:[#allocation2 + $0x10] sm:$0xff]
  %v1090 = vld [vmem:[#allocation2 + $0x18] sm:$0xff]
  %v1091 = vld [vmem:[#allocation2 + $0x20] sm:$0xff]
  %v1092 = vld [vmem:[#allocation2 + $0x28] sm:$0xff]
  %v1093 = vld [vmem:[#allocation2 + $0x30] sm:$0xff]
  %v1094 = vld [vmem:[#allocation2 + $0x38] sm:$0xff]
  %v1095 = vld [vmem:[#allocation2 + $0x40] sm:$0xff]
  %v1096 = vld [vmem:[#allocation2 + $0x48] sm:$0xff]
  %v1097 = vld [vmem:[#allocation2 + $0x50] sm:$0xff]
  %v1098 = vld [vmem:[#allocation2 + $0x58] sm:$0xff]
  %v1099 = vld [vmem:[#allocation2 + $0x60] sm:$0xff]
  %v1100 = vld [vmem:[#allocation2 + $0x68] sm:$0xff]
  %v1101 = vld [vmem:[#allocation2 + $0x70] sm:$0xff]
  %v1102 = vld [vmem:[#allocation2 + $0x78] sm:$0xff]
  %v1103 = vld [vmem:[#allocation2 + $0x80] sm:$0xff]
  %v1104 = vld [vmem:[#allocation2 + $0x88] sm:$0xff]
  %v1105 = vld [vmem:[#allocation2 + $0x90] sm:$0xff]
  %v1106 = vld [vmem:[#allocation2 + $0x98] sm:$0xff]
  %v1107 = vld [vmem:[#allocation2 + $0xa0] sm:$0xff]
  %v1108 = vld [vmem:[#allocation2 + $0xa8] sm:$0xff]
  %v1109 = vld [vmem:[#allocation2 + $0xb0] sm:$0xff]
  %v1110 = vld [vmem:[#allocation2 + $0xb8] sm:$0xff]
  %v1111 = vld [vmem:[#allocation2 + $0xc0] sm:$0xff]
  %v1112 = vld [vmem:[#allocation2 + $0xc8] sm:$0xff]
  %v1113 = vld [vmem:[#allocation2 + $0xd0] sm:$0xff]
  %v1114 = vld [vmem:[#allocation2 + $0xd8] sm:$0xff]
  %v1115 = vld [vmem:[#allocation2 + $0xe0] sm:$0xff]
  %v1116 = vld [vmem:[#allocation2 + $0xe8] sm:$0xff]
  %v1117 = vld [vmem:[#allocation2 + $0xf0] sm:$0xff]
  %v1118 = vld [vmem:[#allocation2 + $0xf8] sm:$0xff]
  %s1119 = scalar_lea.vmem %s0, 80
  %v1120 = vld [vmem:[%s1119] sm:$0xff]
  %v1121 = vld [vmem:[%s1119 + $0x8] sm:$0xff]
  %v1122 = vunpack.c.l.bf16 %v1120
  %v1123 = vunpack.c.h.bf16 %v1120
  %v1124 = vunpack.c.l.bf16 %v1121
  %v1125 = vunpack.c.h.bf16 %v1121
  %v1126 = vpack.c.bf16 %v1084, %v1084
  %1127 = vmatprep.subr.bf16.mxu0 %v1088
  %1128 = vmatpush1.bf16.msra.mxu0 %v1087
  %1129 = vmatprep.subr.bf16.mxu0 %v1092
  %1130 = vmatpush1.bf16.msra.mxu0 %v1091
  %1131 = vmatprep.subr.bf16.mxu0 %v1096
  %1132 = vmatpush1.bf16.msra.mxu0 %v1095
  %1133 = vmatprep.subr.bf16.mxu0 %v1100
  %1134 = vmatpush1.bf16.msra.mxu0 %v1099
  %1135 = vmatprep.subr.bf16.mxu0 %v1104
  %1136 = vmatpush1.bf16.msra.mxu0 %v1103
  %1137 = vmatprep.subr.bf16.mxu0 %v1108
  %1138 = vmatpush1.bf16.msra.mxu0 %v1107
  %1139 = vmatprep.subr.bf16.mxu0 %v1112
  %1140 = vmatpush1.bf16.msra.mxu0 %v1111
  %1141 = vmatprep.subr.bf16.mxu0 %v1116
  %1142 = vmatpush1.bf16.msra.mxu0 %v1115
  %1143 = vmatprep.subr.bf16.mxu0 0
  %1144 = vmatpush1.bf16.msra.mxu0 0
  %1145 = vmatprep.subr.bf16.mxu0 0
  %1146 = vmatpush1.bf16.msra.mxu0 0
  %1147 = vmatprep.subr.bf16.mxu0 0
  %1148 = vmatpush1.bf16.msra.mxu0 0
  %1149 = vmatprep.subr.bf16.mxu0 0
  %1150 = vmatpush1.bf16.msra.mxu0 0
  %1151 = vmatprep.subr.bf16.mxu0 0
  %1152 = vmatpush1.bf16.msra.mxu0 0
  %1153 = vmatprep.subr.bf16.mxu0 0
  %1154 = vmatpush1.bf16.msra.mxu0 0
  %1155 = vmatprep.subr.bf16.mxu0 0
  %1156 = vmatpush1.bf16.msra.mxu0 0
  %1157 = vmatprep.subr.bf16.mxu0 0
  %1158 = vmatpush1.bf16.msra.mxu0 0
  %1159 = vmatprep.mubr.bf16.mxu0 0
  %1160 = vmatmul.mubr.bf16.gmra.mrb[0].mxu0 %v1126
  %v1161 = vpop.f32.mrb[0].mxu0
  %v1162 = vadd.f32 0.0, %v1161
  %v1163 = vpop.f32.mrb[0].mxu0
  %v1164 = vadd.f32 0.0, %v1163
  %v1165 = vpop.f32.mrb[0].mxu0
  %v1166 = vpop.f32.mrb[0].mxu0
  %1167 = vdwg.mxu0
  %1168 = vmatprep.subr.bf16.mxu0 %v1090
  %1169 = vmatpush1.bf16.msra.mxu0 %v1089
  %1170 = vmatprep.subr.bf16.mxu0 %v1094
  %1171 = vmatpush1.bf16.msra.mxu0 %v1093
  %1172 = vmatprep.subr.bf16.mxu0 %v1098
  %1173 = vmatpush1.bf16.msra.mxu0 %v1097
  %1174 = vmatprep.subr.bf16.mxu0 %v1102
  %1175 = vmatpush1.bf16.msra.mxu0 %v1101
  %1176 = vmatprep.subr.bf16.mxu0 %v1106
  %1177 = vmatpush1.bf16.msra.mxu0 %v1105
  %1178 = vmatprep.subr.bf16.mxu0 %v1110
  %1179 = vmatpush1.bf16.msra.mxu0 %v1109
  %1180 = vmatprep.subr.bf16.mxu0 %v1114
  %1181 = vmatpush1.bf16.msra.mxu0 %v1113
  %1182 = vmatprep.subr.bf16.mxu0 %v1118
  %1183 = vmatpush1.bf16.msra.mxu0 %v1117
  %1184 = vmatprep.subr.bf16.mxu0 0
  %1185 = vmatpush1.bf16.msra.mxu0 0
  %1186 = vmatprep.subr.bf16.mxu0 0
  %1187 = vmatpush1.bf16.msra.mxu0 0
  %1188 = vmatprep.subr.bf16.mxu0 0
  %1189 = vmatpush1.bf16.msra.mxu0 0
  %1190 = vmatprep.subr.bf16.mxu0 0
  %1191 = vmatpush1.bf16.msra.mxu0 0
  %1192 = vmatprep.subr.bf16.mxu0 0
  %1193 = vmatpush1.bf16.msra.mxu0 0
  %1194 = vmatprep.subr.bf16.mxu0 0
  %1195 = vmatpush1.bf16.msra.mxu0 0
  %1196 = vmatprep.subr.bf16.mxu0 0
  %1197 = vmatpush1.bf16.msra.mxu0 0
  %1198 = vmatprep.subr.bf16.mxu0 0
  %1199 = vmatpush1.bf16.msra.mxu0 0
  %1200 = vmatprep.mubr.bf16.mxu0 0
  %1201 = vmatmul.mubr.bf16.gmra.mrb[0].mxu0 %v1126
  %v1202 = vpop.f32.mrb[0].mxu0
  %v1203 = vadd.f32 0.0, %v1202
  %v1204 = vpop.f32.mrb[0].mxu0
  %v1205 = vadd.f32 0.0, %v1204
  %v1206 = vpop.f32.mrb[0].mxu0
  %v1207 = vpop.f32.mrb[0].mxu0
  %1208 = vdwg.mxu0
  %v1209 = vadd.f32 %v1122, %v1162
  %v1210 = vadd.f32 %v1123, %v1164
  %v1211 = vadd.f32 %v1124, %v1203
  %v1212 = vadd.f32 %v1125, %v1205
  %v1213 = vxor.u32 %v1209, 2147483648
  %v1214 = vmul.f32 %v1213, 1.442695
  %v1215 = vpow.pop %v1214
  %v1216 = vadd.f32 %v1215, 1.0
  %v1217 = vrcp.pop %v1216
  %v1218 = vmul.f32 1.0, %v1217
  %v1219 = vxor.u32 %v1210, 2147483648
  %v1220 = vmul.f32 %v1219, 1.442695
  %v1221 = vpow.pop %v1220
  %v1222 = vadd.f32 %v1221, 1.0
  %v1223 = vrcp.pop %v1222
  %v1224 = vmul.f32 1.0, %v1223
  %v1225 = vtanh.pop %v1211
  %v1226 = vxor.u32 %v1212, 2147483648
  %v1227 = vmul.f32 %v1226, 1.442695
  %v1228 = vpow.pop %v1227
  %v1229 = vadd.f32 %v1228, 1.0
  %v1230 = vrcp.pop %v1229
  %v1231 = vmul.f32 1.0, %v1230
  %v1232 = vmul.f32 %v1224, %v1082
  %v1233 = vmul.f32 %v1218, %v1225
  %v1234 = vadd.f32 %v1232, %v1233
  %v1235 = vtanh.pop %v1234
  %v1236 = vmul.f32 %v1231, %v1235
  %s1237 = scalar_lea.vmem %s2, 40
  %1238 = vst [vmem:[%s1237] sm:$0xff] %v1236
  %v1239 = vld [vmem:[#allocation2] sm:$0xff]
  %v1240 = vld [vmem:[#allocation2 + $0x8] sm:$0xff]
  %v1241 = vld [vmem:[#allocation2 + $0x10] sm:$0xff]
  %v1242 = vld [vmem:[#allocation2 + $0x18] sm:$0xff]
  %v1243 = vld [vmem:[#allocation2 + $0x20] sm:$0xff]
  %v1244 = vld [vmem:[#allocation2 + $0x28] sm:$0xff]
  %v1245 = vld [vmem:[#allocation2 + $0x30] sm:$0xff]
  %v1246 = vld [vmem:[#allocation2 + $0x38] sm:$0xff]
  %v1247 = vld [vmem:[#allocation2 + $0x40] sm:$0xff]
  %v1248 = vld [vmem:[#allocation2 + $0x48] sm:$0xff]
  %v1249 = vld [vmem:[#allocation2 + $0x50] sm:$0xff]
  %v1250 = vld [vmem:[#allocation2 + $0x58] sm:$0xff]
  %v1251 = vld [vmem:[#allocation2 + $0x60] sm:$0xff]
  %v1252 = vld [vmem:[#allocation2 + $0x68] sm:$0xff]
  %v1253 = vld [vmem:[#allocation2 + $0x70] sm:$0xff]
  %v1254 = vld [vmem:[#allocation2 + $0x78] sm:$0xff]
  %v1255 = vld [vmem:[#allocation2 + $0x80] sm:$0xff]
  %v1256 = vld [vmem:[#allocation2 + $0x88] sm:$0xff]
  %v1257 = vld [vmem:[#allocation2 + $0x90] sm:$0xff]
  %v1258 = vld [vmem:[#allocation2 + $0x98] sm:$0xff]
  %v1259 = vld [vmem:[#allocation2 + $0xa0] sm:$0xff]
  %v1260 = vld [vmem:[#allocation2 + $0xa8] sm:$0xff]
  %v1261 = vld [vmem:[#allocation2 + $0xb0] sm:$0xff]
  %v1262 = vld [vmem:[#allocation2 + $0xb8] sm:$0xff]
  %v1263 = vld [vmem:[#allocation2 + $0xc0] sm:$0xff]
  %v1264 = vld [vmem:[#allocation2 + $0xc8] sm:$0xff]
  %v1265 = vld [vmem:[#allocation2 + $0xd0] sm:$0xff]
  %v1266 = vld [vmem:[#allocation2 + $0xd8] sm:$0xff]
  %v1267 = vld [vmem:[#allocation2 + $0xe0] sm:$0xff]
  %v1268 = vld [vmem:[#allocation2 + $0xe8] sm:$0xff]
  %v1269 = vld [vmem:[#allocation2 + $0xf0] sm:$0xff]
  %v1270 = vld [vmem:[#allocation2 + $0xf8] sm:$0xff]
  %s1271 = scalar_lea.vmem %s0, 96
  %v1272 = vld [vmem:[%s1271] sm:$0xff]
  %v1273 = vld [vmem:[%s1271 + $0x8] sm:$0xff]
  %v1274 = vunpack.c.l.bf16 %v1272
  %v1275 = vunpack.c.h.bf16 %v1272
  %v1276 = vunpack.c.l.bf16 %v1273
  %v1277 = vunpack.c.h.bf16 %v1273
  %v1278 = vpack.c.bf16 %v1236, %v1236
  %1279 = vmatprep.subr.bf16.mxu0 %v1240
  %1280 = vmatpush1.bf16.msra.mxu0 %v1239
  %1281 = vmatprep.subr.bf16.mxu0 %v1244
  %1282 = vmatpush1.bf16.msra.mxu0 %v1243
  %1283 = vmatprep.subr.bf16.mxu0 %v1248
  %1284 = vmatpush1.bf16.msra.mxu0 %v1247
  %1285 = vmatprep.subr.bf16.mxu0 %v1252
  %1286 = vmatpush1.bf16.msra.mxu0 %v1251
  %1287 = vmatprep.subr.bf16.mxu0 %v1256
  %1288 = vmatpush1.bf16.msra.mxu0 %v1255
  %1289 = vmatprep.subr.bf16.mxu0 %v1260
  %1290 = vmatpush1.bf16.msra.mxu0 %v1259
  %1291 = vmatprep.subr.bf16.mxu0 %v1264
  %1292 = vmatpush1.bf16.msra.mxu0 %v1263
  %1293 = vmatprep.subr.bf16.mxu0 %v1268
  %1294 = vmatpush1.bf16.msra.mxu0 %v1267
  %1295 = vmatprep.subr.bf16.mxu0 0
  %1296 = vmatpush1.bf16.msra.mxu0 0
  %1297 = vmatprep.subr.bf16.mxu0 0
  %1298 = vmatpush1.bf16.msra.mxu0 0
  %1299 = vmatprep.subr.bf16.mxu0 0
  %1300 = vmatpush1.bf16.msra.mxu0 0
  %1301 = vmatprep.subr.bf16.mxu0 0
  %1302 = vmatpush1.bf16.msra.mxu0 0
  %1303 = vmatprep.subr.bf16.mxu0 0
  %1304 = vmatpush1.bf16.msra.mxu0 0
  %1305 = vmatprep.subr.bf16.mxu0 0
  %1306 = vmatpush1.bf16.msra.mxu0 0
  %1307 = vmatprep.subr.bf16.mxu0 0
  %1308 = vmatpush1.bf16.msra.mxu0 0
  %1309 = vmatprep.subr.bf16.mxu0 0
  %1310 = vmatpush1.bf16.msra.mxu0 0
  %1311 = vmatprep.mubr.bf16.mxu0 0
  %1312 = vmatmul.mubr.bf16.gmra.mrb[0].mxu0 %v1278
  %v1313 = vpop.f32.mrb[0].mxu0
  %v1314 = vadd.f32 0.0, %v1313
  %v1315 = vpop.f32.mrb[0].mxu0
  %v1316 = vadd.f32 0.0, %v1315
  %v1317 = vpop.f32.mrb[0].mxu0
  %v1318 = vpop.f32.mrb[0].mxu0
  %1319 = vdwg.mxu0
  %1320 = vmatprep.subr.bf16.mxu0 %v1242
  %1321 = vmatpush1.bf16.msra.mxu0 %v1241
  %1322 = vmatprep.subr.bf16.mxu0 %v1246
  %1323 = vmatpush1.bf16.msra.mxu0 %v1245
  %1324 = vmatprep.subr.bf16.mxu0 %v1250
  %1325 = vmatpush1.bf16.msra.mxu0 %v1249
  %1326 = vmatprep.subr.bf16.mxu0 %v1254
  %1327 = vmatpush1.bf16.msra.mxu0 %v1253
  %1328 = vmatprep.subr.bf16.mxu0 %v1258
  %1329 = vmatpush1.bf16.msra.mxu0 %v1257
  %1330 = vmatprep.subr.bf16.mxu0 %v1262
  %1331 = vmatpush1.bf16.msra.mxu0 %v1261
  %1332 = vmatprep.subr.bf16.mxu0 %v1266
  %1333 = vmatpush1.bf16.msra.mxu0 %v1265
  %1334 = vmatprep.subr.bf16.mxu0 %v1270
  %1335 = vmatpush1.bf16.msra.mxu0 %v1269
  %1336 = vmatprep.subr.bf16.mxu0 0
  %1337 = vmatpush1.bf16.msra.mxu0 0
  %1338 = vmatprep.subr.bf16.mxu0 0
  %1339 = vmatpush1.bf16.msra.mxu0 0
  %1340 = vmatprep.subr.bf16.mxu0 0
  %1341 = vmatpush1.bf16.msra.mxu0 0
  %1342 = vmatprep.subr.bf16.mxu0 0
  %1343 = vmatpush1.bf16.msra.mxu0 0
  %1344 = vmatprep.subr.bf16.mxu0 0
  %1345 = vmatpush1.bf16.msra.mxu0 0
  %1346 = vmatprep.subr.bf16.mxu0 0
  %1347 = vmatpush1.bf16.msra.mxu0 0
  %1348 = vmatprep.subr.bf16.mxu0 0
  %1349 = vmatpush1.bf16.msra.mxu0 0
  %1350 = vmatprep.subr.bf16.mxu0 0
  %1351 = vmatpush1.bf16.msra.mxu0 0
  %1352 = vmatprep.mubr.bf16.mxu0 0
  %1353 = vmatmul.mubr.bf16.gmra.mrb[0].mxu0 %v1278
  %v1354 = vpop.f32.mrb[0].mxu0
  %v1355 = vadd.f32 0.0, %v1354
  %v1356 = vpop.f32.mrb[0].mxu0
  %v1357 = vadd.f32 0.0, %v1356
  %v1358 = vpop.f32.mrb[0].mxu0
  %v1359 = vpop.f32.mrb[0].mxu0
  %1360 = vdwg.mxu0
  %v1361 = vadd.f32 %v1274, %v1314
  %v1362 = vadd.f32 %v1275, %v1316
  %v1363 = vadd.f32 %v1276, %v1355
  %v1364 = vadd.f32 %v1277, %v1357
  %v1365 = vxor.u32 %v1361, 2147483648
  %v1366 = vmul.f32 %v1365, 1.442695
  %v1367 = vpow.pop %v1366
  %v1368 = vadd.f32 %v1367, 1.0
  %v1369 = vrcp.pop %v1368
  %v1370 = vmul.f32 1.0, %v1369
  %v1371 = vxor.u32 %v1362, 2147483648
  %v1372 = vmul.f32 %v1371, 1.442695
  %v1373 = vpow.pop %v1372
  %v1374 = vadd.f32 %v1373, 1.0
  %v1375 = vrcp.pop %v1374
  %v1376 = vmul.f32 1.0, %v1375
  %v1377 = vtanh.pop %v1363
  %v1378 = vxor.u32 %v1364, 2147483648
  %v1379 = vmul.f32 %v1378, 1.442695
  %v1380 = vpow.pop %v1379
  %v1381 = vadd.f32 %v1380, 1.0
  %v1382 = vrcp.pop %v1381
  %v1383 = vmul.f32 1.0, %v1382
  %v1384 = vmul.f32 %v1376, %v1234
  %v1385 = vmul.f32 %v1370, %v1377
  %v1386 = vadd.f32 %v1384, %v1385
  %v1387 = vtanh.pop %v1386
  %v1388 = vmul.f32 %v1383, %v1387
  %s1389 = scalar_lea.vmem %s2, 48
  %1390 = vst [vmem:[%s1389] sm:$0xff] %v1388
  %v1391 = vld [vmem:[#allocation2] sm:$0xff]
  %v1392 = vld [vmem:[#allocation2 + $0x8] sm:$0xff]
  %v1393 = vld [vmem:[#allocation2 + $0x10] sm:$0xff]
  %v1394 = vld [vmem:[#allocation2 + $0x18] sm:$0xff]
  %v1395 = vld [vmem:[#allocation2 + $0x20] sm:$0xff]
  %v1396 = vld [vmem:[#allocation2 + $0x28] sm:$0xff]
  %v1397 = vld [vmem:[#allocation2 + $0x30] sm:$0xff]
  %v1398 = vld [vmem:[#allocation2 + $0x38] sm:$0xff]
  %v1399 = vld [vmem:[#allocation2 + $0x40] sm:$0xff]
  %v1400 = vld [vmem:[#allocation2 + $0x48] sm:$0xff]
  %v1401 = vld [vmem:[#allocation2 + $0x50] sm:$0xff]
  %v1402 = vld [vmem:[#allocation2 + $0x58] sm:$0xff]
  %v1403 = vld [vmem:[#allocation2 + $0x60] sm:$0xff]
  %v1404 = vld [vmem:[#allocation2 + $0x68] sm:$0xff]
  %v1405 = vld [vmem:[#allocation2 + $0x70] sm:$0xff]
  %v1406 = vld [vmem:[#allocation2 + $0x78] sm:$0xff]
  %v1407 = vld [vmem:[#allocation2 + $0x80] sm:$0xff]
  %v1408 = vld [vmem:[#allocation2 + $0x88] sm:$0xff]
  %v1409 = vld [vmem:[#allocation2 + $0x90] sm:$0xff]
  %v1410 = vld [vmem:[#allocation2 + $0x98] sm:$0xff]
  %v1411 = vld [vmem:[#allocation2 + $0xa0] sm:$0xff]
  %v1412 = vld [vmem:[#allocation2 + $0xa8] sm:$0xff]
  %v1413 = vld [vmem:[#allocation2 + $0xb0] sm:$0xff]
  %v1414 = vld [vmem:[#allocation2 + $0xb8] sm:$0xff]
  %v1415 = vld [vmem:[#allocation2 + $0xc0] sm:$0xff]
  %v1416 = vld [vmem:[#allocation2 + $0xc8] sm:$0xff]
  %v1417 = vld [vmem:[#allocation2 + $0xd0] sm:$0xff]
  %v1418 = vld [vmem:[#allocation2 + $0xd8] sm:$0xff]
  %v1419 = vld [vmem:[#allocation2 + $0xe0] sm:$0xff]
  %v1420 = vld [vmem:[#allocation2 + $0xe8] sm:$0xff]
  %v1421 = vld [vmem:[#allocation2 + $0xf0] sm:$0xff]
  %v1422 = vld [vmem:[#allocation2 + $0xf8] sm:$0xff]
  %s1423 = scalar_lea.vmem %s0, 112
  %v1424 = vld [vmem:[%s1423] sm:$0xff]
  %v1425 = vld [vmem:[%s1423 + $0x8] sm:$0xff]
  %v1426 = vunpack.c.l.bf16 %v1424
  %v1427 = vunpack.c.h.bf16 %v1424
  %v1428 = vunpack.c.l.bf16 %v1425
  %v1429 = vunpack.c.h.bf16 %v1425
  %v1430 = vpack.c.bf16 %v1388, %v1388
  %1431 = vmatprep.subr.bf16.mxu0 %v1392
  %1432 = vmatpush1.bf16.msra.mxu0 %v1391
  %1433 = vmatprep.subr.bf16.mxu0 %v1396
  %1434 = vmatpush1.bf16.msra.mxu0 %v1395
  %1435 = vmatprep.subr.bf16.mxu0 %v1400
  %1436 = vmatpush1.bf16.msra.mxu0 %v1399
  %1437 = vmatprep.subr.bf16.mxu0 %v1404
  %1438 = vmatpush1.bf16.msra.mxu0 %v1403
  %1439 = vmatprep.subr.bf16.mxu0 %v1408
  %1440 = vmatpush1.bf16.msra.mxu0 %v1407
  %1441 = vmatprep.subr.bf16.mxu0 %v1412
  %1442 = vmatpush1.bf16.msra.mxu0 %v1411
  %1443 = vmatprep.subr.bf16.mxu0 %v1416
  %1444 = vmatpush1.bf16.msra.mxu0 %v1415
  %1445 = vmatprep.subr.bf16.mxu0 %v1420
  %1446 = vmatpush1.bf16.msra.mxu0 %v1419
  %1447 = vmatprep.subr.bf16.mxu0 0
  %1448 = vmatpush1.bf16.msra.mxu0 0
  %1449 = vmatprep.subr.bf16.mxu0 0
  %1450 = vmatpush1.bf16.msra.mxu0 0
  %1451 = vmatprep.subr.bf16.mxu0 0
  %1452 = vmatpush1.bf16.msra.mxu0 0
  %1453 = vmatprep.subr.bf16.mxu0 0
  %1454 = vmatpush1.bf16.msra.mxu0 0
  %1455 = vmatprep.subr.bf16.mxu0 0
  %1456 = vmatpush1.bf16.msra.mxu0 0
  %1457 = vmatprep.subr.bf16.mxu0 0
  %1458 = vmatpush1.bf16.msra.mxu0 0
  %1459 = vmatprep.subr.bf16.mxu0 0
  %1460 = vmatpush1.bf16.msra.mxu0 0
  %1461 = vmatprep.subr.bf16.mxu0 0
  %1462 = vmatpush1.bf16.msra.mxu0 0
  %1463 = vmatprep.mubr.bf16.mxu0 0
  %1464 = vmatmul.mubr.bf16.gmra.mrb[0].mxu0 %v1430
  %v1465 = vpop.f32.mrb[0].mxu0
  %v1466 = vadd.f32 0.0, %v1465
  %v1467 = vpop.f32.mrb[0].mxu0
  %v1468 = vadd.f32 0.0, %v1467
  %v1469 = vpop.f32.mrb[0].mxu0
  %v1470 = vpop.f32.mrb[0].mxu0
  %1471 = vdwg.mxu0
  %1472 = vmatprep.subr.bf16.mxu0 %v1394
  %1473 = vmatpush1.bf16.msra.mxu0 %v1393
  %1474 = vmatprep.subr.bf16.mxu0 %v1398
  %1475 = vmatpush1.bf16.msra.mxu0 %v1397
  %1476 = vmatprep.subr.bf16.mxu0 %v1402
  %1477 = vmatpush1.bf16.msra.mxu0 %v1401
  %1478 = vmatprep.subr.bf16.mxu0 %v1406
  %1479 = vmatpush1.bf16.msra.mxu0 %v1405
  %1480 = vmatprep.subr.bf16.mxu0 %v1410
  %1481 = vmatpush1.bf16.msra.mxu0 %v1409
  %1482 = vmatprep.subr.bf16.mxu0 %v1414
  %1483 = vmatpush1.bf16.msra.mxu0 %v1413
  %1484 = vmatprep.subr.bf16.mxu0 %v1418
  %1485 = vmatpush1.bf16.msra.mxu0 %v1417
  %1486 = vmatprep.subr.bf16.mxu0 %v1422
  %1487 = vmatpush1.bf16.msra.mxu0 %v1421
  %1488 = vmatprep.subr.bf16.mxu0 0
  %1489 = vmatpush1.bf16.msra.mxu0 0
  %1490 = vmatprep.subr.bf16.mxu0 0
  %1491 = vmatpush1.bf16.msra.mxu0 0
  %1492 = vmatprep.subr.bf16.mxu0 0
  %1493 = vmatpush1.bf16.msra.mxu0 0
  %1494 = vmatprep.subr.bf16.mxu0 0
  %1495 = vmatpush1.bf16.msra.mxu0 0
  %1496 = vmatprep.subr.bf16.mxu0 0
  %1497 = vmatpush1.bf16.msra.mxu0 0
  %1498 = vmatprep.subr.bf16.mxu0 0
  %1499 = vmatpush1.bf16.msra.mxu0 0
  %1500 = vmatprep.subr.bf16.mxu0 0
  %1501 = vmatpush1.bf16.msra.mxu0 0
  %1502 = vmatprep.subr.bf16.mxu0 0
  %1503 = vmatpush1.bf16.msra.mxu0 0
  %1504 = vmatprep.mubr.bf16.mxu0 0
  %1505 = vmatmul.mubr.bf16.gmra.mrb[0].mxu0 %v1430
  %v1506 = vpop.f32.mrb[0].mxu0
  %v1507 = vadd.f32 0.0, %v1506
  %v1508 = vpop.f32.mrb[0].mxu0
  %v1509 = vadd.f32 0.0, %v1508
  %v1510 = vpop.f32.mrb[0].mxu0
  %v1511 = vpop.f32.mrb[0].mxu0
  %1512 = vdwg.mxu0
  %v1513 = vadd.f32 %v1426, %v1466
  %v1514 = vadd.f32 %v1427, %v1468
  %v1515 = vadd.f32 %v1428, %v1507
  %v1516 = vadd.f32 %v1429, %v1509
  %v1517 = vxor.u32 %v1513, 2147483648
  %v1518 = vmul.f32 %v1517, 1.442695
  %v1519 = vpow.pop %v1518
  %v1520 = vadd.f32 %v1519, 1.0
  %v1521 = vrcp.pop %v1520
  %v1522 = vmul.f32 1.0, %v1521
  %v1523 = vxor.u32 %v1514, 2147483648
  %v1524 = vmul.f32 %v1523, 1.442695
  %v1525 = vpow.pop %v1524
  %v1526 = vadd.f32 %v1525, 1.0
  %v1527 = vrcp.pop %v1526
  %v1528 = vmul.f32 1.0, %v1527
  %v1529 = vtanh.pop %v1515
  %v1530 = vxor.u32 %v1516, 2147483648
  %v1531 = vmul.f32 %v1530, 1.442695
  %v1532 = vpow.pop %v1531
  %v1533 = vadd.f32 %v1532, 1.0
  %v1534 = vrcp.pop %v1533
  %v1535 = vmul.f32 1.0, %v1534
  %v1536 = vmul.f32 %v1528, %v1386
  %v1537 = vmul.f32 %v1522, %v1529
  %v1538 = vadd.f32 %v1536, %v1537
  %v1539 = vtanh.pop %v1538
  %v1540 = vmul.f32 %v1535, %v1539
  %s1541 = scalar_lea.vmem %s2, 56
  %1542 = vst [vmem:[%s1541] sm:$0xff] %v1540
  %1543 = vst [vmem:[#allocation4] sm:$0xff] %v1540
  %1544 = vst [vmem:[#allocation5] sm:$0xff] %v1538
  // Predicated region
  $region47: #{encoder_rnn_forward.1} parent=0 // pred_check
    %p1545 = pneg %p13
  $region48: #{encoder_rnn_forward.1} parent=0 // pred_check_branch
    %1547 = sbr.rel (%p1545) target = $region50
  $region49: #{encoder_rnn_forward.1} parent=0 // pred_region
    %1548 = vst [vmem:[%s3] sm:$0xff] %v1540
    %1549 = vst [vmem:[%s4] sm:$0xff] %v1538
  $region50: #{encoder_rnn_forward.1} parent=0 // pred_fallthru
    _
  // Predicated region
  $region51: #{encoder_rnn_forward.1} parent=0 // pred_check
    _
  $region52: #{encoder_rnn_forward.1} parent=0 // pred_check_branch
    %1551 = sbr.rel (0) target = $region54
  $region53: #{encoder_rnn_forward.1} parent=0 // pred_region
    _
  $region54: #{encoder_rnn_forward.1} parent=0 // pred_fallthru
    _
  // Predicated region
  $region55: #{encoder_rnn_forward.1} parent=0 // pred_check
    _
  $region56: #{encoder_rnn_forward.1} parent=0 // pred_check_branch
    %1553 = sbr.rel (0) target = $region58
  $region57: #{encoder_rnn_forward.1} parent=0 // pred_region
    _
  $region58: #{encoder_rnn_forward.1} parent=0 // pred_fallthru
    _
  // Predicated region
  $region59: #{encoder_rnn_forward.1} parent=0 // pred_check
    _
  $region60: #{encoder_rnn_forward.1} parent=0 // pred_check_branch
    %1555 = sbr.rel (0) target = $region62
  $region61: #{encoder_rnn_forward.1} parent=0 // pred_region
    _
  $region62: #{encoder_rnn_forward.1} parent=0 // pred_fallthru
    _
  // Predicated region
  $region63: #{encoder_rnn_forward.1} parent=0 // pred_check
    _
  $region64: #{encoder_rnn_forward.1} parent=0 // pred_check_branch
    %1557 = sbr.rel (0) target = $region66
  $region65: #{encoder_rnn_forward.1} parent=0 // pred_region
    _
  $region66: #{encoder_rnn_forward.1} parent=0 // pred_fallthru
    _
  // Predicated region
  $region67: #{encoder_rnn_forward.1} parent=0 // pred_check
    _
  $region68: #{encoder_rnn_forward.1} parent=0 // pred_check_branch
    %1559 = sbr.rel (0) target = $region70
  $region69: #{encoder_rnn_forward.1} parent=0 // pred_region
    _
  $region70: #{encoder_rnn_forward.1} parent=0 // pred_fallthru
    _
  // Predicated region
  $region71: #{encoder_rnn_forward.1} parent=0 // pred_check
    _
  $region72: #{encoder_rnn_forward.1} parent=0 // pred_check_branch
    %1561 = sbr.rel (0) target = $region74
  $region73: #{encoder_rnn_forward.1} parent=0 // pred_region
    _
  $region74: #{encoder_rnn_forward.1} parent=0 // pred_fallthru
    _
  %1562 = vsyncmov [#allocation3]
  %s1563 = vpop.sfrf %1562
  %p1564 = scmp.eq.s32.totalorder %s1563, 0
  %p1565 = pneg %p1564
  %1567 = shalt.err (%p1565)

</llo_original>
